<compile_context>
chip_gen: v7x
topology: tpu7x:2x2x1
jax: 0.10.0
libtpu: 0.0.40
codegen_flags: <defaults>
</compile_context>

<pallas_src>
import functools

import jax
import jax.numpy as jnp
from jax.experimental import pallas as pl
from jax.experimental.pallas import tpu as pltpu

_HALO = 3    # max (K - 1) // 2 over the three convs (K = 3, 5, 7)
_OFF = 128   # lane-aligned halo width of the staging scratch


def _double_conv_kernel(x_ref, w1_ref, b1_ref, w2_ref, b2_ref, w3_ref, b3_ref,
                        o_ref, pbuf,
                        *, L, L_pad, Cin, Cout, bt, compute_dtype):
    """One batch tile per grid step. x_ref: (Cin, bt*L_pad), o_ref: (Cout, bt*L_pad)."""
    NL = bt * L_pad
    cd = compute_dtype
    f32 = jnp.float32

    # Zero only the never-written halo columns (2 small lane-aligned stores),
    # not the whole scratch.  Done every step so it is megacore-safe (each
    # TensorCore has its own scratch when the grid axis is "parallel").
    zero_halo = jnp.zeros((pbuf.shape[0], _OFF), cd)
    pbuf[:, 0:_OFF] = zero_halo
    pbuf[:, _OFF + NL:_OFF + NL + _OFF] = zero_halo

    def conv_relu(h, c_in, w_ref, b_ref, K, zero_tail):
        p = (K - 1) // 2
        # Lane-aligned (offset 128), unmasked staging store of the activation.
        pbuf[0:c_in, _OFF:_OFF + NL] = h.astype(cd)
        if zero_tail:
            # Re-zero each batch segment's padded tail [L, L_pad) so the
            # shifted reads below see exact Conv1d zero padding (covers both
            # this segment's right edge and the next segment's left edge).
            zt = jnp.zeros((c_in, L_pad - L), cd)
            for b in range(bt):
                pbuf[0:c_in, _OFF + b * L_pad + L:_OFF + (b + 1) * L_pad] = zt
        # K shifted reads -> K MXU matmuls accumulated in f32 values.
        # No materialized im2col concatenate.
        y = None
        for k in range(K):
            s = k - p
            hk = pbuf[0:c_in, _OFF + s:_OFF + s + NL]          # (c_in, NL)
            contrib = jnp.dot(w_ref[k], hk, preferred_element_type=f32)
            y = contrib if y is None else y + contrib
        # Bias + ReLU in f32 on the VPU.
        return jnp.maximum(y + b_ref[...], 0.0)                # (Cout, NL) f32

    h = x_ref[...]                                             # tails already zero (wrapper pad)
    h = conv_relu(h, Cin, w1_ref, b1_ref, 3, zero_tail=False)
    h = conv_relu(h, Cout, w2_ref, b2_ref, 5, zero_tail=True)
    h = conv_relu(h, Cout, w3_ref, b3_ref, 7, zero_tail=True)
    # Dropout: identity (inference / eval mode).
    o_ref[...] = h.astype(o_ref.dtype)


def double_conv(x, w1, b1, w2, b2, w3, b3, *, compute_dtype=jnp.bfloat16):
    """x: (N, Cin, L) f32.  w_i: PyTorch Conv1d layout (Cout, Cin_i, K_i).  b_i: (Cout,)."""
    N, Cin, L = x.shape
    Cout = w1.shape[0]
    cd = compute_dtype

    # Lane-dense padded length; keep >= _HALO zero lanes after each segment so
    # halo reads of the next segment / own right edge stay exact zero padding.
    L_pad = ((L + 127) // 128) * 128
    if L_pad - L < _HALO:
        L_pad += 128

    # Batch tile: widen the matmul lane axis and amortize per-step overhead,
    # but keep >= 2 grid steps (megacore) and a bounded per-step lane width.
    bt = 1
    for cand in range(2, N + 1):
        if N % cand:
            continue
        if cand * L_pad > 8192:
            continue
        if N >= 2 and N // cand < 2:
            continue
        bt = cand
    grid = N // bt
    NL = bt * L_pad

    # Channels-major layout with (batch, length) merged into one lane axis:
    # every kernel load/store is then lane-dense; one fused XLA copy in/out.
    # TODO(synk): fold pad/transpose into the kernel to drop this HBM pass.
    x_p = jnp.pad(x, ((0, 0), (0, 0), (0, L_pad - L)))
    x2 = jnp.transpose(x_p, (1, 0, 2)).reshape(Cin, N * L_pad).astype(cd)

    def to_kco(w):  # PyTorch (Cout, Cin, K) -> (K, Cout, Cin)
        return jnp.transpose(w, (2, 0, 1)).astype(cd)

    w1r, w2r, w3r = to_kco(w1), to_kco(w2), to_kco(w3)
    b1r = b1.reshape(Cout, 1).astype(jnp.float32)
    b2r = b2.reshape(Cout, 1).astype(jnp.float32)
    b3r = b3.reshape(Cout, 1).astype(jnp.float32)

    C_max = max(Cin, Cout)
    esize = jnp.dtype(cd).itemsize

    # VMEM budget: double-buffered I/O blocks, resident weights/bias, halo
    # scratch, and per-layer f32 temporaries (accumulators / live values).
    in_blk = Cin * NL * esize
    out_blk = Cout * NL * 4
    w_bytes = (w1r.size + w2r.size + w3r.size) * esize
    b_bytes = 3 * 8 * 128 * 4                      # padded bias tiles
    pbuf_bytes = C_max * (NL + 2 * _OFF) * esize
    tmp_bytes = 4 * Cout * NL * 4 + 2 * C_max * NL * 4
    need = 2 * (in_blk + out_blk) + 2 * (w_bytes + b_bytes) + pbuf_bytes + tmp_bytes
    try:
        vmem_cap = pltpu.get_tpu_info().vmem_capacity_bytes
    except Exception:
        vmem_cap = 64 << 20                        # smallest per-core VMEM (v7x)
    vmem_limit = int(min(2 * need + (8 << 20), int(0.8 * vmem_cap)))

    flops = 2 * N * L_pad * Cout * (3 * Cin + 5 * Cout + 7 * Cout)
    bytes_accessed = (x2.size * esize + Cout * N * L_pad * 4
                      + w_bytes + 3 * Cout * 4)

    def const(a):
        return pl.BlockSpec(a.shape, lambda n, _nd=a.ndim: (0,) * _nd)

    out2 = pl.pallas_call(
        functools.partial(_double_conv_kernel, L=L, L_pad=L_pad, Cin=Cin,
                          Cout=Cout, bt=bt, compute_dtype=cd),
        out_shape=jax.ShapeDtypeStruct((Cout, N * L_pad), jnp.float32),
        grid_spec=pltpu.PrefetchScalarGridSpec(
            num_scalar_prefetch=0,
            grid=(grid,),
            in_specs=[
                pl.BlockSpec((Cin, NL), lambda n: (0, n)),
                const(w1r), const(b1r),
                const(w2r), const(b2r),
                const(w3r), const(b3r),
            ],
            out_specs=pl.BlockSpec((Cout, NL), lambda n: (0, n)),
            scratch_shapes=[pltpu.VMEM((C_max, NL + 2 * _OFF), cd)],
        ),
        compiler_params=pltpu.CompilerParams(
            dimension_semantics=("parallel",),
            vmem_limit_bytes=vmem_limit),
        cost_estimate=pl.CostEstimate(flops=flops, transcendentals=0,
                                      bytes_accessed=bytes_accessed),
    )(x2, w1r, b1r, w2r, b2r, w3r, b3r)

    out = out2.reshape(Cout, N, L_pad).transpose(1, 0, 2)[:, :, :L]
    return out


def ref_forward(x, w1, b1, w2, b2, w3, b3):
    """Pure-JAX reference matching PyTorch Conv1d('same' zero padding) -> ReLU x3."""
    def conv(h, w, b):
        p = (w.shape[-1] - 1) // 2
        y = jax.lax.conv_general_dilated(
            h, w, window_strides=(1,), padding=[(p, p)],
            dimension_numbers=("NCH", "OIH", "NCH"))
        return jnp.maximum(y + b[None, :, None], 0.0)
    h = conv(x, w1, b1)
    h = conv(h, w2, b2)
    h = conv(h, w3, b3)
    return h


if __name__ == "__main__":
    N, in_ch, out_ch, L = 2, 4, 8, 16
    key = jax.random.PRNGKey(0)
    kx, k1, k2, k3, kb1, kb2, kb3 = jax.random.split(key, 7)

    x = jax.random.normal(kx, (N, in_ch, L), jnp.float32)
    # PyTorch Conv1d weight layout: (out_ch, in_ch, K); bias: (out_ch,)
    w1 = 0.1 * jax.random.normal(k1, (out_ch, in_ch, 3), jnp.float32)
    w2 = 0.1 * jax.random.normal(k2, (out_ch, out_ch, 5), jnp.float32)
    w3 = 0.1 * jax.random.normal(k3, (out_ch, out_ch, 7), jnp.float32)
    b1 = 0.1 * jax.random.normal(kb1, (out_ch,), jnp.float32)
    b2 = 0.1 * jax.random.normal(kb2, (out_ch,), jnp.float32)
    b3 = 0.1 * jax.random.normal(kb3, (out_ch,), jnp.float32)

    ref = ref_forward(x, w1, b1, w2, b2, w3, b3)

    # f32 MXU operands: tight match with the reference (v5e-safe path).
    out_f32 = jax.block_until_ready(
        double_conv(x, w1, b1, w2, b2, w3, b3, compute_dtype=jnp.float32))
    assert out_f32.shape == (N, out_ch, L)
    assert jnp.allclose(out_f32, ref, atol=1e-5, rtol=1e-5), "f32 mismatch vs reference"

    # Default path: bf16 MXU operands, f32 accumulate + f32 bias/ReLU
    # (v6e / v7x fast path).
    out_bf16 = jax.block_until_ready(double_conv(x, w1, b1, w2, b2, w3, b3))
    assert out_bf16.shape == (N, out_ch, L)
    assert jnp.allclose(out_bf16, ref, atol=5e-2, rtol=5e-2), "bf16 mismatch vs reference"

    print("KERNEL_OK")
</pallas_src>

<mosaic_0001>
module attributes {stable_mosaic.version = 11 : i64} {
  func.func @_double_conv_kernel(%arg0: i32, %arg1: memref<4x128xf32, #tpu.memory_space<vmem>>, %arg2: memref<3x8x4xf32, #tpu.memory_space<vmem>>, %arg3: memref<8x1xf32, #tpu.memory_space<vmem>>, %arg4: memref<5x8x8xf32, #tpu.memory_space<vmem>>, %arg5: memref<8x1xf32, #tpu.memory_space<vmem>>, %arg6: memref<7x8x8xf32, #tpu.memory_space<vmem>>, %arg7: memref<8x1xf32, #tpu.memory_space<vmem>>, %arg8: memref<8x128xf32, #tpu.memory_space<vmem>>, %arg9: memref<8x384xf32, #tpu.memory_space<vmem>>) attributes {dimension_semantics = [#tpu.dimension_semantics<parallel>], iteration_bounds = array<i64: 2>, scalar_prefetch = 0 : i64, scratch_operands = 1 : i64, tpu.core_type = #tpu.core_type<tc>, window_params = [{transform_indices = @transform_0, window_bounds = array<i64: 4, 128>}, {pipeline_mode = #tpu.pipeline_mode<synchronous>, transform_indices = @transform_1, window_bounds = array<i64: 3, 8, 4>}, {pipeline_mode = #tpu.pipeline_mode<synchronous>, transform_indices = @transform_2, window_bounds = array<i64: 8, 1>}, {pipeline_mode = #tpu.pipeline_mode<synchronous>, transform_indices = @transform_3, window_bounds = array<i64: 5, 8, 8>}, {pipeline_mode = #tpu.pipeline_mode<synchronous>, transform_indices = @transform_4, window_bounds = array<i64: 8, 1>}, {pipeline_mode = #tpu.pipeline_mode<synchronous>, transform_indices = @transform_5, window_bounds = array<i64: 7, 8, 8>}, {pipeline_mode = #tpu.pipeline_mode<synchronous>, transform_indices = @transform_6, window_bounds = array<i64: 8, 1>}, {transform_indices = @transform_7, window_bounds = array<i64: 8, 128>}]} {
    %cst = arith.constant 0.000000e+00 : f32
    %0 = vector.broadcast %cst : f32 to vector<8x128xf32>
    %c0 = arith.constant 0 : index
    %c0_0 = arith.constant 0 : index
    %1 = vector.load %arg9[%c0, %c0_0] : memref<8x384xf32, #tpu.memory_space<vmem>>, vector<8x128xf32>
    tpu.vector_store %arg9[%c0, %c0_0], %0 {strides = array<i32>} : memref<8x384xf32, #tpu.memory_space<vmem>>, vector<8x128xf32>,
    %c0_1 = arith.constant 0 : index
    %c256 = arith.constant 256 : index
    %2 = vector.load %arg9[%c0_1, %c256] : memref<8x384xf32, #tpu.memory_space<vmem>>, vector<8x128xf32>
    tpu.vector_store %arg9[%c0_1, %c256], %0 {strides = array<i32>} : memref<8x384xf32, #tpu.memory_space<vmem>>, vector<8x128xf32>,
    %c0_2 = arith.constant 0 : index
    %c0_3 = arith.constant 0 : index
    %3 = vector.load %arg1[%c0_2, %c0_3] : memref<4x128xf32, #tpu.memory_space<vmem>>, vector<4x128xf32>
    %c0_4 = arith.constant 0 : index
    %c128 = arith.constant 128 : index
    %4 = vector.load %arg9[%c0_4, %c128] : memref<8x384xf32, #tpu.memory_space<vmem>>, vector<4x128xf32>
    tpu.vector_store %arg9[%c0_4, %c128], %3 {strides = array<i32>} : memref<8x384xf32, #tpu.memory_space<vmem>>, vector<4x128xf32>,
    %c0_5 = arith.constant 0 : index
    %c127 = arith.constant 127 : index
    %5 = vector.load %arg9[%c0_5, %c127] : memref<8x384xf32, #tpu.memory_space<vmem>>, vector<4x128xf32>
    %c0_6 = arith.constant 0 : index
    %c0_7 = arith.constant 0 : index
    %c0_8 = arith.constant 0 : index
    %6 = vector.load %arg2[%c0_6, %c0_7, %c0_8] : memref<3x8x4xf32, #tpu.memory_space<vmem>>, vector<1x8x4xf32>
    %7 = vector.shape_cast %6 : vector<1x8x4xf32> to vector<8x4xf32>
    %cst_9 = arith.constant dense<0.000000e+00> : vector<8x128xf32>
    %8 = tpu.matmul %7, %5, %cst_9 {dimension_numbers = #tpu.dot_dimension_numbers<[1], [0], [0], [1], [0, 0, 1, 1], [], []>} : vector<8x4xf32>, vector<4x128xf32>, vector<8x128xf32> -> vector<8x128xf32>
    %c0_10 = arith.constant 0 : index
    %c128_11 = arith.constant 128 : index
    %9 = vector.load %arg9[%c0_10, %c128_11] : memref<8x384xf32, #tpu.memory_space<vmem>>, vector<4x128xf32>
    %c1 = arith.constant 1 : index
    %c0_12 = arith.constant 0 : index
    %c0_13 = arith.constant 0 : index
    %10 = vector.load %arg2[%c1, %c0_12, %c0_13] : memref<3x8x4xf32, #tpu.memory_space<vmem>>, vector<1x8x4xf32>
    %11 = vector.shape_cast %10 : vector<1x8x4xf32> to vector<8x4xf32>
    %cst_14 = arith.constant dense<0.000000e+00> : vector<8x128xf32>
    %12 = tpu.matmul %11, %9, %cst_14 {dimension_numbers = #tpu.dot_dimension_numbers<[1], [0], [0], [1], [0, 0, 1, 1], [], []>} : vector<8x4xf32>, vector<4x128xf32>, vector<8x128xf32> -> vector<8x128xf32>
    %13 = arith.addf %8, %12 : vector<8x128xf32>
    %c0_15 = arith.constant 0 : index
    %c129 = arith.constant 129 : index
    %14 = vector.load %arg9[%c0_15, %c129] : memref<8x384xf32, #tpu.memory_space<vmem>>, vector<4x128xf32>
    %c2 = arith.constant 2 : index
    %c0_16 = arith.constant 0 : index
    %c0_17 = arith.constant 0 : index
    %15 = vector.load %arg2[%c2, %c0_16, %c0_17] : memref<3x8x4xf32, #tpu.memory_space<vmem>>, vector<1x8x4xf32>
    %16 = vector.shape_cast %15 : vector<1x8x4xf32> to vector<8x4xf32>
    %cst_18 = arith.constant dense<0.000000e+00> : vector<8x128xf32>
    %17 = tpu.matmul %16, %14, %cst_18 {dimension_numbers = #tpu.dot_dimension_numbers<[1], [0], [0], [1], [0, 0, 1, 1], [], []>} : vector<8x4xf32>, vector<4x128xf32>, vector<8x128xf32> -> vector<8x128xf32>
    %18 = arith.addf %13, %17 : vector<8x128xf32>
    %c0_19 = arith.constant 0 : index
    %c0_20 = arith.constant 0 : index
    %19 = vector.load %arg3[%c0_19, %c0_20] : memref<8x1xf32, #tpu.memory_space<vmem>>, vector<8x1xf32>
    %20 = vector.broadcast %19 : vector<8x1xf32> to vector<8x128xf32>
    %21 = arith.addf %18, %20 : vector<8x128xf32>
    %cst_21 = arith.constant 0.000000e+00 : f32
    %22 = vector.broadcast %cst_21 : f32 to vector<8x128xf32>
    %23 = arith.maximumf %21, %22 : vector<8x128xf32>
    %c0_22 = arith.constant 0 : index
    %c128_23 = arith.constant 128 : index
    %24 = vector.load %arg9[%c0_22, %c128_23] : memref<8x384xf32, #tpu.memory_space<vmem>>, vector<8x128xf32>
    tpu.vector_store %arg9[%c0_22, %c128_23], %23 {strides = array<i32>} : memref<8x384xf32, #tpu.memory_space<vmem>>, vector<8x128xf32>,
    %cst_24 = arith.constant 0.000000e+00 : f32
    %25 = vector.broadcast %cst_24 : f32 to vector<8x112xf32>
    %c0_25 = arith.constant 0 : index
    %c144 = arith.constant 144 : index
    %26 = vector.load %arg9[%c0_25, %c144] : memref<8x384xf32, #tpu.memory_space<vmem>>, vector<8x112xf32>
    tpu.vector_store %arg9[%c0_25, %c144], %25 {strides = array<i32>} : memref<8x384xf32, #tpu.memory_space<vmem>>, vector<8x112xf32>,
    %c0_26 = arith.constant 0 : index
    %c126 = arith.constant 126 : index
    %27 = vector.load %arg9[%c0_26, %c126] : memref<8x384xf32, #tpu.memory_space<vmem>>, vector<8x128xf32>
    %c0_27 = arith.constant 0 : index
    %c0_28 = arith.constant 0 : index
    %c0_29 = arith.constant 0 : index
    %28 = vector.load %arg4[%c0_27, %c0_28, %c0_29] : memref<5x8x8xf32, #tpu.memory_space<vmem>>, vector<1x8x8xf32>
    %29 = vector.shape_cast %28 : vector<1x8x8xf32> to vector<8x8xf32>
    %cst_30 = arith.constant dense<0.000000e+00> : vector<8x128xf32>
    %30 = tpu.matmul %29, %27, %cst_30 {dimension_numbers = #tpu.dot_dimension_numbers<[1], [0], [0], [1], [0, 0, 1, 1], [], []>} : vector<8x8xf32>, vector<8x128xf32>, vector<8x128xf32> -> vector<8x128xf32>
    %c0_31 = arith.constant 0 : index
    %c127_32 = arith.constant 127 : index
    %31 = vector.load %arg9[%c0_31, %c127_32] : memref<8x384xf32, #tpu.memory_space<vmem>>, vector<8x128xf32>
    %c1_33 = arith.constant 1 : index
    %c0_34 = arith.constant 0 : index
    %c0_35 = arith.constant 0 : index
    %32 = vector.load %arg4[%c1_33, %c0_34, %c0_35] : memref<5x8x8xf32, #tpu.memory_space<vmem>>, vector<1x8x8xf32>
    %33 = vector.shape_cast %32 : vector<1x8x8xf32> to vector<8x8xf32>
    %cst_36 = arith.constant dense<0.000000e+00> : vector<8x128xf32>
    %34 = tpu.matmul %33, %31, %cst_36 {dimension_numbers = #tpu.dot_dimension_numbers<[1], [0], [0], [1], [0, 0, 1, 1], [], []>} : vector<8x8xf32>, vector<8x128xf32>, vector<8x128xf32> -> vector<8x128xf32>
    %35 = arith.addf %30, %34 : vector<8x128xf32>
    %c0_37 = arith.constant 0 : index
    %c128_38 = arith.constant 128 : index
    %36 = vector.load %arg9[%c0_37, %c128_38] : memref<8x384xf32, #tpu.memory_space<vmem>>, vector<8x128xf32>
    %c2_39 = arith.constant 2 : index
    %c0_40 = arith.constant 0 : index
    %c0_41 = arith.constant 0 : index
    %37 = vector.load %arg4[%c2_39, %c0_40, %c0_41] : memref<5x8x8xf32, #tpu.memory_space<vmem>>, vector<1x8x8xf32>
    %38 = vector.shape_cast %37 : vector<1x8x8xf32> to vector<8x8xf32>
    %cst_42 = arith.constant dense<0.000000e+00> : vector<8x128xf32>
    %39 = tpu.matmul %38, %36, %cst_42 {dimension_numbers = #tpu.dot_dimension_numbers<[1], [0], [0], [1], [0, 0, 1, 1], [], []>} : vector<8x8xf32>, vector<8x128xf32>, vector<8x128xf32> -> vector<8x128xf32>
    %40 = arith.addf %35, %39 : vector<8x128xf32>
    %c0_43 = arith.constant 0 : index
    %c129_44 = arith.constant 129 : index
    %41 = vector.load %arg9[%c0_43, %c129_44] : memref<8x384xf32, #tpu.memory_space<vmem>>, vector<8x128xf32>
    %c3 = arith.constant 3 : index
    %c0_45 = arith.constant 0 : index
    %c0_46 = arith.constant 0 : index
    %42 = vector.load %arg4[%c3, %c0_45, %c0_46] : memref<5x8x8xf32, #tpu.memory_space<vmem>>, vector<1x8x8xf32>
    %43 = vector.shape_cast %42 : vector<1x8x8xf32> to vector<8x8xf32>
    %cst_47 = arith.constant dense<0.000000e+00> : vector<8x128xf32>
    %44 = tpu.matmul %43, %41, %cst_47 {dimension_numbers = #tpu.dot_dimension_numbers<[1], [0], [0], [1], [0, 0, 1, 1], [], []>} : vector<8x8xf32>, vector<8x128xf32>, vector<8x128xf32> -> vector<8x128xf32>
    %45 = arith.addf %40, %44 : vector<8x128xf32>
    %c0_48 = arith.constant 0 : index
    %c130 = arith.constant 130 : index
    %46 = vector.load %arg9[%c0_48, %c130] : memref<8x384xf32, #tpu.memory_space<vmem>>, vector<8x128xf32>
    %c4 = arith.constant 4 : index
    %c0_49 = arith.constant 0 : index
    %c0_50 = arith.constant 0 : index
    %47 = vector.load %arg4[%c4, %c0_49, %c0_50] : memref<5x8x8xf32, #tpu.memory_space<vmem>>, vector<1x8x8xf32>
    %48 = vector.shape_cast %47 : vector<1x8x8xf32> to vector<8x8xf32>
    %cst_51 = arith.constant dense<0.000000e+00> : vector<8x128xf32>
    %49 = tpu.matmul %48, %46, %cst_51 {dimension_numbers = #tpu.dot_dimension_numbers<[1], [0], [0], [1], [0, 0, 1, 1], [], []>} : vector<8x8xf32>, vector<8x128xf32>, vector<8x128xf32> -> vector<8x128xf32>
    %50 = arith.addf %45, %49 : vector<8x128xf32>
    %c0_52 = arith.constant 0 : index
    %c0_53 = arith.constant 0 : index
    %51 = vector.load %arg5[%c0_52, %c0_53] : memref<8x1xf32, #tpu.memory_space<vmem>>, vector<8x1xf32>
    %52 = vector.broadcast %51 : vector<8x1xf32> to vector<8x128xf32>
    %53 = arith.addf %50, %52 : vector<8x128xf32>
    %cst_54 = arith.constant 0.000000e+00 : f32
    %54 = vector.broadcast %cst_54 : f32 to vector<8x128xf32>
    %55 = arith.maximumf %53, %54 : vector<8x128xf32>
    %c0_55 = arith.constant 0 : index
    %c128_56 = arith.constant 128 : index
    %56 = vector.load %arg9[%c0_55, %c128_56] : memref<8x384xf32, #tpu.memory_space<vmem>>, vector<8x128xf32>
    tpu.vector_store %arg9[%c0_55, %c128_56], %55 {strides = array<i32>} : memref<8x384xf32, #tpu.memory_space<vmem>>, vector<8x128xf32>,
    %cst_57 = arith.constant 0.000000e+00 : f32
    %57 = vector.broadcast %cst_57 : f32 to vector<8x112xf32>
    %c0_58 = arith.constant 0 : index
    %c144_59 = arith.constant 144 : index
    %58 = vector.load %arg9[%c0_58, %c144_59] : memref<8x384xf32, #tpu.memory_space<vmem>>, vector<8x112xf32>
    tpu.vector_store %arg9[%c0_58, %c144_59], %57 {strides = array<i32>} : memref<8x384xf32, #tpu.memory_space<vmem>>, vector<8x112xf32>,
    %c0_60 = arith.constant 0 : index
    %c125 = arith.constant 125 : index
    %59 = vector.load %arg9[%c0_60, %c125] : memref<8x384xf32, #tpu.memory_space<vmem>>, vector<8x128xf32>
    %c0_61 = arith.constant 0 : index
    %c0_62 = arith.constant 0 : index
    %c0_63 = arith.constant 0 : index
    %60 = vector.load %arg6[%c0_61, %c0_62, %c0_63] : memref<7x8x8xf32, #tpu.memory_space<vmem>>, vector<1x8x8xf32>
    %61 = vector.shape_cast %60 : vector<1x8x8xf32> to vector<8x8xf32>
    %cst_64 = arith.constant dense<0.000000e+00> : vector<8x128xf32>
    %62 = tpu.matmul %61, %59, %cst_64 {dimension_numbers = #tpu.dot_dimension_numbers<[1], [0], [0], [1], [0, 0, 1, 1], [], []>} : vector<8x8xf32>, vector<8x128xf32>, vector<8x128xf32> -> vector<8x128xf32>
    %c0_65 = arith.constant 0 : index
    %c126_66 = arith.constant 126 : index
    %63 = vector.load %arg9[%c0_65, %c126_66] : memref<8x384xf32, #tpu.memory_space<vmem>>, vector<8x128xf32>
    %c1_67 = arith.constant 1 : index
    %c0_68 = arith.constant 0 : index
    %c0_69 = arith.constant 0 : index
    %64 = vector.load %arg6[%c1_67, %c0_68, %c0_69] : memref<7x8x8xf32, #tpu.memory_space<vmem>>, vector<1x8x8xf32>
    %65 = vector.shape_cast %64 : vector<1x8x8xf32> to vector<8x8xf32>
    %cst_70 = arith.constant dense<0.000000e+00> : vector<8x128xf32>
    %66 = tpu.matmul %65, %63, %cst_70 {dimension_numbers = #tpu.dot_dimension_numbers<[1], [0], [0], [1], [0, 0, 1, 1], [], []>} : vector<8x8xf32>, vector<8x128xf32>, vector<8x128xf32> -> vector<8x128xf32>
    %67 = arith.addf %62, %66 : vector<8x128xf32>
    %c0_71 = arith.constant 0 : index
    %c127_72 = arith.constant 127 : index
    %68 = vector.load %arg9[%c0_71, %c127_72] : memref<8x384xf32, #tpu.memory_space<vmem>>, vector<8x128xf32>
    %c2_73 = arith.constant 2 : index
    %c0_74 = arith.constant 0 : index
    %c0_75 = arith.constant 0 : index
    %69 = vector.load %arg6[%c2_73, %c0_74, %c0_75] : memref<7x8x8xf32, #tpu.memory_space<vmem>>, vector<1x8x8xf32>
    %70 = vector.shape_cast %69 : vector<1x8x8xf32> to vector<8x8xf32>
    %cst_76 = arith.constant dense<0.000000e+00> : vector<8x128xf32>
    %71 = tpu.matmul %70, %68, %cst_76 {dimension_numbers = #tpu.dot_dimension_numbers<[1], [0], [0], [1], [0, 0, 1, 1], [], []>} : vector<8x8xf32>, vector<8x128xf32>, vector<8x128xf32> -> vector<8x128xf32>
    %72 = arith.addf %67, %71 : vector<8x128xf32>
    %c0_77 = arith.constant 0 : index
    %c128_78 = arith.constant 128 : index
    %73 = vector.load %arg9[%c0_77, %c128_78] : memref<8x384xf32, #tpu.memory_space<vmem>>, vector<8x128xf32>
    %c3_79 = arith.constant 3 : index
    %c0_80 = arith.constant 0 : index
    %c0_81 = arith.constant 0 : index
    %74 = vector.load %arg6[%c3_79, %c0_80, %c0_81] : memref<7x8x8xf32, #tpu.memory_space<vmem>>, vector<1x8x8xf32>
    %75 = vector.shape_cast %74 : vector<1x8x8xf32> to vector<8x8xf32>
    %cst_82 = arith.constant dense<0.000000e+00> : vector<8x128xf32>
    %76 = tpu.matmul %75, %73, %cst_82 {dimension_numbers = #tpu.dot_dimension_numbers<[1], [0], [0], [1], [0, 0, 1, 1], [], []>} : vector<8x8xf32>, vector<8x128xf32>, vector<8x128xf32> -> vector<8x128xf32>
    %77 = arith.addf %72, %76 : vector<8x128xf32>
    %c0_83 = arith.constant 0 : index
    %c129_84 = arith.constant 129 : index
    %78 = vector.load %arg9[%c0_83, %c129_84] : memref<8x384xf32, #tpu.memory_space<vmem>>, vector<8x128xf32>
    %c4_85 = arith.constant 4 : index
    %c0_86 = arith.constant 0 : index
    %c0_87 = arith.constant 0 : index
    %79 = vector.load %arg6[%c4_85, %c0_86, %c0_87] : memref<7x8x8xf32, #tpu.memory_space<vmem>>, vector<1x8x8xf32>
    %80 = vector.shape_cast %79 : vector<1x8x8xf32> to vector<8x8xf32>
    %cst_88 = arith.constant dense<0.000000e+00> : vector<8x128xf32>
    %81 = tpu.matmul %80, %78, %cst_88 {dimension_numbers = #tpu.dot_dimension_numbers<[1], [0], [0], [1], [0, 0, 1, 1], [], []>} : vector<8x8xf32>, vector<8x128xf32>, vector<8x128xf32> -> vector<8x128xf32>
    %82 = arith.addf %77, %81 : vector<8x128xf32>
    %c0_89 = arith.constant 0 : index
    %c130_90 = arith.constant 130 : index
    %83 = vector.load %arg9[%c0_89, %c130_90] : memref<8x384xf32, #tpu.memory_space<vmem>>, vector<8x128xf32>
    %c5 = arith.constant 5 : index
    %c0_91 = arith.constant 0 : index
    %c0_92 = arith.constant 0 : index
    %84 = vector.load %arg6[%c5, %c0_91, %c0_92] : memref<7x8x8xf32, #tpu.memory_space<vmem>>, vector<1x8x8xf32>
    %85 = vector.shape_cast %84 : vector<1x8x8xf32> to vector<8x8xf32>
    %cst_93 = arith.constant dense<0.000000e+00> : vector<8x128xf32>
    %86 = tpu.matmul %85, %83, %cst_93 {dimension_numbers = #tpu.dot_dimension_numbers<[1], [0], [0], [1], [0, 0, 1, 1], [], []>} : vector<8x8xf32>, vector<8x128xf32>, vector<8x128xf32> -> vector<8x128xf32>
    %87 = arith.addf %82, %86 : vector<8x128xf32>
    %c0_94 = arith.constant 0 : index
    %c131 = arith.constant 131 : index
    %88 = vector.load %arg9[%c0_94, %c131] : memref<8x384xf32, #tpu.memory_space<vmem>>, vector<8x128xf32>
    %c6 = arith.constant 6 : index
    %c0_95 = arith.constant 0 : index
    %c0_96 = arith.constant 0 : index
    %89 = vector.load %arg6[%c6, %c0_95, %c0_96] : memref<7x8x8xf32, #tpu.memory_space<vmem>>, vector<1x8x8xf32>
    %90 = vector.shape_cast %89 : vector<1x8x8xf32> to vector<8x8xf32>
    %cst_97 = arith.constant dense<0.000000e+00> : vector<8x128xf32>
    %91 = tpu.matmul %90, %88, %cst_97 {dimension_numbers = #tpu.dot_dimension_numbers<[1], [0], [0], [1], [0, 0, 1, 1], [], []>} : vector<8x8xf32>, vector<8x128xf32>, vector<8x128xf32> -> vector<8x128xf32>
    %92 = arith.addf %87, %91 : vector<8x128xf32>
    %c0_98 = arith.constant 0 : index
    %c0_99 = arith.constant 0 : index
    %93 = vector.load %arg7[%c0_98, %c0_99] : memref<8x1xf32, #tpu.memory_space<vmem>>, vector<8x1xf32>
    %94 = vector.broadcast %93 : vector<8x1xf32> to vector<8x128xf32>
    %95 = arith.addf %92, %94 : vector<8x128xf32>
    %cst_100 = arith.constant 0.000000e+00 : f32
    %96 = vector.broadcast %cst_100 : f32 to vector<8x128xf32>
    %97 = arith.maximumf %95, %96 : vector<8x128xf32>
    %c0_101 = arith.constant 0 : index
    %c0_102 = arith.constant 0 : index
    %98 = vector.load %arg8[%c0_101, %c0_102] : memref<8x128xf32, #tpu.memory_space<vmem>>, vector<8x128xf32>
    tpu.vector_store %arg8[%c0_101, %c0_102], %97 {strides = array<i32>} : memref<8x128xf32, #tpu.memory_space<vmem>>, vector<8x128xf32>,
    return
  }
  func.func @transform_0(%arg0: i32) -> (i32, i32) {
    %c0_i32 = arith.constant 0 : i32
    %c0_i32_0 = arith.constant 0 : i32
    return %c0_i32, %arg0 : i32, i32
  }
  func.func @transform_1(%arg0: i32) -> (i32, i32, i32) {
    %c0_i32 = arith.constant 0 : i32
    %c0_i32_0 = arith.constant 0 : i32
    %c0_i32_1 = arith.constant 0 : i32
    %c0_i32_2 = arith.constant 0 : i32
    return %c0_i32, %c0_i32_0, %c0_i32_1 : i32, i32, i32
  }
  func.func @transform_2(%arg0: i32) -> (i32, i32) {
    %c0_i32 = arith.constant 0 : i32
    %c0_i32_0 = arith.constant 0 : i32
    %c0_i32_1 = arith.constant 0 : i32
    return %c0_i32, %c0_i32_0 : i32, i32
  }
  func.func @transform_3(%arg0: i32) -> (i32, i32, i32) {
    %c0_i32 = arith.constant 0 : i32
    %c0_i32_0 = arith.constant 0 : i32
    %c0_i32_1 = arith.constant 0 : i32
    %c0_i32_2 = arith.constant 0 : i32
    return %c0_i32, %c0_i32_0, %c0_i32_1 : i32, i32, i32
  }
  func.func @transform_4(%arg0: i32) -> (i32, i32) {
    %c0_i32 = arith.constant 0 : i32
    %c0_i32_0 = arith.constant 0 : i32
    %c0_i32_1 = arith.constant 0 : i32
    return %c0_i32, %c0_i32_0 : i32, i32
  }
  func.func @transform_5(%arg0: i32) -> (i32, i32, i32) {
    %c0_i32 = arith.constant 0 : i32
    %c0_i32_0 = arith.constant 0 : i32
    %c0_i32_1 = arith.constant 0 : i32
    %c0_i32_2 = arith.constant 0 : i32
    return %c0_i32, %c0_i32_0, %c0_i32_1 : i32, i32, i32
  }
  func.func @transform_6(%arg0: i32) -> (i32, i32) {
    %c0_i32 = arith.constant 0 : i32
    %c0_i32_0 = arith.constant 0 : i32
    %c0_i32_1 = arith.constant 0 : i32
    return %c0_i32, %c0_i32_0 : i32, i32
  }
  func.func @transform_7(%arg0: i32) -> (i32, i32) {
    %c0_i32 = arith.constant 0 : i32
    %c0_i32_0 = arith.constant 0 : i32
    return %c0_i32, %arg0 : i32, i32
  }
}

</mosaic_0001>

<llo_original>
// kernel: tpu_custom_call.1
$region0: #{tpu_custom_call.1}
  #allocation0 [shape = 'u32[]', space=smem, size = 0x4, offset = 0x4, fixed_abs, tag = 'smem constant byte address 0x4 - core index']
  #allocation1 [shape = 'u32[144,128]{1,0:T(1,128)}', space=vmem, size = 0x12000, scoped, tag = 'internal scratch']
  #allocation2 [shape = 'f32[8,384]{1,0:T(8,128)}', space=vmem, size = 0x3000, scoped, tag = 'scratch operand']
  %s0 = inlined_call_operand.vmem [shape: f32[4,256], index: 0, kind: input, shape index: {}]
  %s1 = inlined_call_operand.vmem [shape: f32[3,8,4], index: 1, kind: input, shape index: {}]
  %s2 = inlined_call_operand.vmem [shape: f32[8,1], index: 2, kind: input, shape index: {}]
  %s3 = inlined_call_operand.hbm [shape: f32[5,8,8], index: 3, kind: input, shape index: {}]
  %s4 = inlined_call_operand.vmem [shape: f32[8,1], index: 4, kind: input, shape index: {}]
  %s5 = inlined_call_operand.vmem [shape: f32[7,8,8], index: 5, kind: input, shape index: {}]
  %s6 = inlined_call_operand.vmem [shape: f32[8,1], index: 6, kind: input, shape index: {}]
  %s7 = inlined_call_operand.hbm [shape: f32[8,256], index: 7, kind: output, shape index: {}]
  %s8 = sld [smem:[#allocation0]]
  $region65: #{tpu_custom_call.1} parent=0
    _
  %s10 = ssub.s32 1, %s8
  %s11 = scalar_select 0, %s10, %s8
  $region1: #{tpu_custom_call.1} parent=0
    #allocation3 [shape = 'u8[20480]{0}', space=vmem, size = 0x5000, scoped, tag = 'input window, operand 3, single buffered']
    #allocation4 [shape = 's32[2]{0}', space=sflag, size = 0x8, scoped, tag = 'scoped memory for tpu_custom_call.1']
    #allocation5 [shape = 's32[2]{0}', space=sflag, size = 0x8, scoped, tag = 'scoped memory for tpu_custom_call.1']
    #allocation6 [shape = 'u8[8192]{0}', space=vmem, size = 0x2000, scoped, tag = 'output window, operand 0']
    %12 = vsyncpa [#allocation4], 0
    %13 = vsyncpa [#allocation5], 0
    %s14 = scalar_lea.sflag [#allocation5], 1
    %15 = vsyncpa %s14, 0
    loop: start=0, step=1, limit=4
    $region2: #{tpu_custom_call.1} parent=1 // loop_pre_header
      _
    $region3: #{tpu_custom_call.1} parent=1 // loop_header
      %s17 = sphi 0, %s21
      %p18 = scmp.ge.s32.totalorder %s17, 4
      %s27 = sphi 0, %s29
      %s30 = sphi 0, %s27
      %s31 = sphi 0, %s30
      %s47 = sphi 0, %s31
      %s51 = sphi 0, %s51
      %s53 = sphi 0, %s51
      %s54 = sphi 0, %s53
      %s68 = sphi 0, %s54
      %s72 = sphi 0, %s72
      %s74 = sphi 0, %s72
      %s75 = sphi 0, %s74
      %s89 = sphi 0, %s75
      %s93 = sphi 0, %s93
      %s95 = sphi 0, %s93
      %s96 = sphi 0, %s95
      %s110 = sphi 0, %s96
      %s114 = sphi 0, %s114
      %s116 = sphi 0, %s114
      %s117 = sphi 0, %s116
      %s131 = sphi 0, %s117
      %s135 = sphi 0, %s135
      %s137 = sphi 0, %s135
      %s138 = sphi 0, %s137
      %s152 = sphi 0, %s138
      %s156 = sphi 0, %s156
      %s158 = sphi 0, %s156
      %s159 = sphi 0, %s158
      %s173 = sphi 0, %s159
      %s179 = sphi 0, %s181
      %s182 = sphi 0, %s179
      %s183 = sphi 0, %s182
      %s199 = sphi 0, %s183
    $region4: #{tpu_custom_call.1} parent=1 // loop_header_branch
      %20 = sbr.rel (%p18) target = $region8
    $region5: #{tpu_custom_call.1} parent=1 // loop_body
      %s22 = ssub.s32 %s17, 1
      %s23 = ssub.s32 %s17, 2
      %s24 = sadd.s32 %s17, 1
      %s25 = ssub.s32 %s17, %s24
      %p26 = scmp.eq.s32.totalorder %s25, 0
      %s28 = sadd.s32 %s27, 1
      %s29 = scalar_select %p26, %s27, %s28
      %p32 = pneg %p26
      %p33 = scmp.eq.s32.totalorder %s17, 1
      %p34 = por %p32, %p33
      %p35 = scmp.ne.s32.totalorder %s27, %s30
      %p36 = scmp.eq.s32.totalorder %s17, 0
      %p37 = por %p35, %p36
      %p38 = scmp.ne.s32.totalorder %s27, %s30
      %p39 = scmp.eq.s32.totalorder %s22, 1
      %p40 = por %p38, %p39
      %p41 = scmp.ne.s32.totalorder %s30, %s31
      %p42 = scmp.eq.s32.totalorder %s22, 0
      %p43 = por %p41, %p42
      %p44 = scmp.ne.s32.totalorder %s30, %s31
      %p45 = scmp.eq.s32.totalorder %s23, 1
      %p46 = por %p44, %p45
      %p48 = scmp.ne.s32.totalorder %s31, %s47
      %p49 = scmp.eq.s32.totalorder %s23, 0
      %p50 = por %p48, %p49
      %s52 = sadd.s32 %s51, 1
      %p55 = scmp.eq.s32.totalorder %s17, 1
      %p56 = scmp.ne.s32.totalorder %s51, %s53
      %p57 = scmp.eq.s32.totalorder %s17, 0
      %p58 = por %p56, %p57
      %p59 = scmp.ne.s32.totalorder %s51, %s53
      %p60 = scmp.eq.s32.totalorder %s22, 1
      %p61 = por %p59, %p60
      %p62 = scmp.ne.s32.totalorder %s53, %s54
      %p63 = scmp.eq.s32.totalorder %s22, 0
      %p64 = por %p62, %p63
      %p65 = scmp.ne.s32.totalorder %s53, %s54
      %p66 = scmp.eq.s32.totalorder %s23, 1
      %p67 = por %p65, %p66
      %p69 = scmp.ne.s32.totalorder %s54, %s68
      %p70 = scmp.eq.s32.totalorder %s23, 0
      %p71 = por %p69, %p70
      %s73 = sadd.s32 %s72, 1
      %p76 = scmp.eq.s32.totalorder %s17, 1
      %p77 = scmp.ne.s32.totalorder %s72, %s74
      %p78 = scmp.eq.s32.totalorder %s17, 0
      %p79 = por %p77, %p78
      %p80 = scmp.ne.s32.totalorder %s72, %s74
      %p81 = scmp.eq.s32.totalorder %s22, 1
      %p82 = por %p80, %p81
      %p83 = scmp.ne.s32.totalorder %s74, %s75
      %p84 = scmp.eq.s32.totalorder %s22, 0
      %p85 = por %p83, %p84
      %p86 = scmp.ne.s32.totalorder %s74, %s75
      %p87 = scmp.eq.s32.totalorder %s23, 1
      %p88 = por %p86, %p87
      %p90 = scmp.ne.s32.totalorder %s75, %s89
      %p91 = scmp.eq.s32.totalorder %s23, 0
      %p92 = por %p90, %p91
      %s94 = sadd.s32 %s93, 1
      %p97 = scmp.eq.s32.totalorder %s17, 1
      %p98 = scmp.ne.s32.totalorder %s93, %s95
      %p99 = scmp.eq.s32.totalorder %s17, 0
      %p100 = por %p98, %p99
      %p101 = scmp.ne.s32.totalorder %s93, %s95
      %p102 = scmp.eq.s32.totalorder %s22, 1
      %p103 = por %p101, %p102
      %p104 = scmp.ne.s32.totalorder %s95, %s96
      %p105 = scmp.eq.s32.totalorder %s22, 0
      %p106 = por %p104, %p105
      %p107 = scmp.ne.s32.totalorder %s95, %s96
      %p108 = scmp.eq.s32.totalorder %s23, 1
      %p109 = por %p107, %p108
      %p111 = scmp.ne.s32.totalorder %s96, %s110
      %p112 = scmp.eq.s32.totalorder %s23, 0
      %p113 = por %p111, %p112
      %s115 = sadd.s32 %s114, 1
      %p118 = scmp.eq.s32.totalorder %s17, 1
      %p119 = scmp.ne.s32.totalorder %s114, %s116
      %p120 = scmp.eq.s32.totalorder %s17, 0
      %p121 = por %p119, %p120
      %p122 = scmp.ne.s32.totalorder %s114, %s116
      %p123 = scmp.eq.s32.totalorder %s22, 1
      %p124 = por %p122, %p123
      %p125 = scmp.ne.s32.totalorder %s116, %s117
      %p126 = scmp.eq.s32.totalorder %s22, 0
      %p127 = por %p125, %p126
      %p128 = scmp.ne.s32.totalorder %s116, %s117
      %p129 = scmp.eq.s32.totalorder %s23, 1
      %p130 = por %p128, %p129
      %p132 = scmp.ne.s32.totalorder %s117, %s131
      %p133 = scmp.eq.s32.totalorder %s23, 0
      %p134 = por %p132, %p133
      %s136 = sadd.s32 %s135, 1
      %p139 = scmp.eq.s32.totalorder %s17, 1
      %p140 = scmp.ne.s32.totalorder %s135, %s137
      %p141 = scmp.eq.s32.totalorder %s17, 0
      %p142 = por %p140, %p141
      %p143 = scmp.ne.s32.totalorder %s135, %s137
      %p144 = scmp.eq.s32.totalorder %s22, 1
      %p145 = por %p143, %p144
      %p146 = scmp.ne.s32.totalorder %s137, %s138
      %p147 = scmp.eq.s32.totalorder %s22, 0
      %p148 = por %p146, %p147
      %p149 = scmp.ne.s32.totalorder %s137, %s138
      %p150 = scmp.eq.s32.totalorder %s23, 1
      %p151 = por %p149, %p150
      %p153 = scmp.ne.s32.totalorder %s138, %s152
      %p154 = scmp.eq.s32.totalorder %s23, 0
      %p155 = por %p153, %p154
      %s157 = sadd.s32 %s156, 1
      %p160 = scmp.eq.s32.totalorder %s17, 1
      %p161 = scmp.ne.s32.totalorder %s156, %s158
      %p162 = scmp.eq.s32.totalorder %s17, 0
      %p163 = por %p161, %p162
      %p164 = scmp.ne.s32.totalorder %s156, %s158
      %p165 = scmp.eq.s32.totalorder %s22, 1
      %p166 = por %p164, %p165
      %p167 = scmp.ne.s32.totalorder %s158, %s159
      %p168 = scmp.eq.s32.totalorder %s22, 0
      %p169 = por %p167, %p168
      %p170 = scmp.ne.s32.totalorder %s158, %s159
      %p171 = scmp.eq.s32.totalorder %s23, 1
      %p172 = por %p170, %p171
      %p174 = scmp.ne.s32.totalorder %s159, %s173
      %p175 = scmp.eq.s32.totalorder %s23, 0
      %p176 = por %p174, %p175
      %s177 = ssub.s32 %s17, %s24
      %p178 = scmp.eq.s32.totalorder %s177, 0
      %s180 = sadd.s32 %s179, 1
      %s181 = scalar_select %p178, %s179, %s180
      %p184 = pneg %p178
      %p185 = scmp.eq.s32.totalorder %s17, 1
      %p186 = por %p184, %p185
      %p187 = scmp.ne.s32.totalorder %s179, %s182
      %p188 = scmp.eq.s32.totalorder %s17, 0
      %p189 = por %p187, %p188
      %p190 = scmp.ne.s32.totalorder %s179, %s182
      %p191 = scmp.eq.s32.totalorder %s22, 1
      %p192 = por %p190, %p191
      %p193 = scmp.ne.s32.totalorder %s182, %s183
      %p194 = scmp.eq.s32.totalorder %s22, 0
      %p195 = por %p193, %p194
      %p196 = scmp.ne.s32.totalorder %s182, %s183
      %p197 = scmp.eq.s32.totalorder %s23, 1
      %p198 = por %p196, %p197
      %p200 = scmp.ne.s32.totalorder %s183, %s199
      %p201 = scmp.eq.s32.totalorder %s23, 0
      %p202 = por %p200, %p201
      %p203 = scmp.le.s32.totalorder 1, %s17
      %p204 = scmp.lt.s32.totalorder %s17, 3
      %p205 = pnand %p203, %p204
      %p206 = pneg %p205
      // Predicated region
      $region9: #{tpu_custom_call.1} parent=5 // pred_check
        _
      $region10: #{tpu_custom_call.1} parent=5 // pred_check_branch
        %208 = sbr.rel (%p205) target = $region12
      $region11: #{tpu_custom_call.1} parent=5 // pred_region
        %s209 = ssub.s32 %s17, 1
        // Predicated region
        $region13: #{tpu_custom_call.1} parent=11 // pred_check
          %p210 = pneg %p64
        $region14: #{tpu_custom_call.1} parent=11 // pred_check_branch
          %212 = sbr.rel (%p210) target = $region16
        $region15: #{tpu_custom_call.1} parent=11 // pred_region
          _
        $region16: #{tpu_custom_call.1} parent=11 // pred_fallthru
          _
        // Predicated region
        $region17: #{tpu_custom_call.1} parent=11 // pred_check
          %p213 = pneg %p85
        $region18: #{tpu_custom_call.1} parent=11 // pred_check_branch
          %215 = sbr.rel (%p213) target = $region20
        $region19: #{tpu_custom_call.1} parent=11 // pred_region
          _
        $region20: #{tpu_custom_call.1} parent=11 // pred_fallthru
          _
        // Predicated region
        $region21: #{tpu_custom_call.1} parent=11 // pred_check
          %p216 = pneg %p106
        $region22: #{tpu_custom_call.1} parent=11 // pred_check_branch
          %218 = sbr.rel (%p216) target = $region24
        $region23: #{tpu_custom_call.1} parent=11 // pred_region
          %s220 = ssub.s32 640, 640
          %221 = vsyncadd [#allocation4], %s220
          %s222 = sshll.u32 [#allocation3], 4
          %s223 = int_to_ptr.vmem [resolvable:$true] %s222
          %228 = dma.hbm_to_vmem [thread:$0]  %s3, 640, %s223, [#allocation4], 128, 128, 8
        $region24: #{tpu_custom_call.1} parent=11 // pred_fallthru
          _
        // Predicated region
        $region25: #{tpu_custom_call.1} parent=11 // pred_check
          %p229 = pneg %p127
        $region26: #{tpu_custom_call.1} parent=11 // pred_check_branch
          %231 = sbr.rel (%p229) target = $region28
        $region27: #{tpu_custom_call.1} parent=11 // pred_region
          _
        $region28: #{tpu_custom_call.1} parent=11 // pred_fallthru
          _
        // Predicated region
        $region29: #{tpu_custom_call.1} parent=11 // pred_check
          %p232 = pneg %p148
        $region30: #{tpu_custom_call.1} parent=11 // pred_check_branch
          %234 = sbr.rel (%p232) target = $region32
        $region31: #{tpu_custom_call.1} parent=11 // pred_region
          _
        $region32: #{tpu_custom_call.1} parent=11 // pred_fallthru
          _
        // Predicated region
        $region33: #{tpu_custom_call.1} parent=11 // pred_check
          %p235 = pneg %p169
        $region34: #{tpu_custom_call.1} parent=11 // pred_check_branch
          %237 = sbr.rel (%p235) target = $region36
        $region35: #{tpu_custom_call.1} parent=11 // pred_region
          _
        $region36: #{tpu_custom_call.1} parent=11 // pred_fallthru
          _
      $region12: #{tpu_custom_call.1} parent=5 // pred_fallthru
        _
      %p238 = scmp.lt.s32.totalorder %s17, 2
      // Predicated region
      $region37: #{tpu_custom_call.1} parent=5 // pred_check
        %p239 = pneg %p238
      $region38: #{tpu_custom_call.1} parent=5 // pred_check_branch
        %241 = sbr.rel (%p239) target = $region40
      $region39: #{tpu_custom_call.1} parent=5 // pred_region
        // Predicated region
        $region41: #{tpu_custom_call.1} parent=39 // pred_check
          %p242 = pneg %p37
        $region42: #{tpu_custom_call.1} parent=39 // pred_check_branch
          %244 = sbr.rel (%p242) target = $region44
        $region43: #{tpu_custom_call.1} parent=39 // pred_region
          %p245 = scmp.lt.s32.totalorder %s17, 1
          %s246 = scalar_select %p245, %s17, 1
          %s247 = smul.addr %s246, 4
          %s248 = scalar_lea.vmem %s0, %s247
        $region44: #{tpu_custom_call.1} parent=39 // pred_fallthru
          _
      $region40: #{tpu_custom_call.1} parent=5 // pred_fallthru
        _
      %p249 = scmp.le.s32.totalorder 1, %s17
      %p250 = scmp.lt.s32.totalorder %s17, 3
      %p251 = pnand %p249, %p250
      %p252 = pneg %p251
      // Predicated region
      $region45: #{tpu_custom_call.1} parent=5 // pred_check
        _
      $region46: #{tpu_custom_call.1} parent=5 // pred_check_branch
        %254 = sbr.rel (%p251) target = $region48
      $region47: #{tpu_custom_call.1} parent=5 // pred_region
        %s255 = ssub.s32 %s17, 1
        // Predicated region
        $region49: #{tpu_custom_call.1} parent=47 // pred_check
          %p256 = pneg %p106
        $region50: #{tpu_custom_call.1} parent=47 // pred_check_branch
          %258 = sbr.rel (%p256) target = $region52
        $region51: #{tpu_custom_call.1} parent=47 // pred_region
          %259 = dma.done [#allocation4], 640
        $region52: #{tpu_custom_call.1} parent=47 // pred_fallthru
          _
        %p260 = scmp.lt.s32.totalorder %s22, 1
        %s261 = scalar_select %p260, %s22, 1
        %s262 = smul.addr %s261, 4
        %s263 = scalar_lea.vmem %s0, %s262
        %p264 = pneg %p43
        %p265 = pneg %p40
        %p266 = pneg %p64
        %p267 = pneg %p61
        %p268 = pneg %p85
        %p269 = pneg %p82
        %p270 = pneg %p106
        %p271 = pneg %p103
        %p272 = pneg %p127
        %p273 = pneg %p124
        %p274 = pneg %p148
        %p275 = pneg %p145
        %p276 = pneg %p169
        %p277 = pneg %p166
        %p278 = pneg %p195
        %p279 = pneg %p192
        %s280 = sand.u32 %s182, 1
        %s281 = scalar_lea.sflag [#allocation5], %s280
        %s282 = sand.u32 %s182, 1
        %s283 = smul.addr %s282, 8
        %s284 = scalar_lea.vmem [#allocation6], %s283
        %p285 = scmp.lt.s32.totalorder %s22, 1
        %s286 = scalar_select %p285, %s22, 1
        %s287 = smul.addr %s286, 4
        %s288 = scalar_lea.vmem %s0, %s287
        %289 = vst [vmem:[#allocation2] sm:$0xff] 0.0
        %290 = vst [vmem:[#allocation2 + $0x10] sm:$0xff] 0.0
        %v291 = vld [vmem:[%s288] sm:$0xf]
        %292 = vst [vmem:[#allocation2 + $0x8] sm:$0xf] %v291
        %v293 = vld [vmem:[#allocation2] sm:$0xf]
        %v294 = vld [vmem:[#allocation2 + $0x8] sm:$0xf]
        %v295 = vld [vmem:[%s1] sm:$0xff]
        %s296 = scalar_lea.vmem %s1, 8
        %v297 = vld [vmem:[%s296] sm:$0xff]
        %vm298 = vcmask 31744
        %v300 = vsel %vm298, %v297, 0
        %vm302 = vcmask 1043456
        %v304 = vsel %vm302, %v294, 0
        %306 = vmatprep.subr.mxu0 0.0
        %307 = vmatpush1.msra.mxu0 %v304
        %308 = vmatprep.subr.mxu0 0.0
        %309 = vmatpush1.msra.mxu0 0.0
        %310 = vmatprep.subr.mxu0 0.0
        %311 = vmatpush1.msra.mxu0 0.0
        %312 = vmatprep.subr.mxu0 0.0
        %313 = vmatpush1.msra.mxu0 0.0
        %314 = vmatprep.subr.mxu0 0.0
        %315 = vmatpush1.msra.mxu0 0.0
        %316 = vmatprep.subr.mxu0 0.0
        %317 = vmatpush1.msra.mxu0 0.0
        %318 = vmatprep.subr.mxu0 0.0
        %319 = vmatpush1.msra.mxu0 0.0
        %320 = vmatprep.subr.mxu0 0.0
        %321 = vmatpush1.msra.mxu0 0.0
        %322 = vmatprep.subr.mxu0 0.0
        %323 = vmatpush1.msra.mxu0 0.0
        %324 = vmatprep.subr.mxu0 0.0
        %325 = vmatpush1.msra.mxu0 0.0
        %326 = vmatprep.subr.mxu0 0.0
        %327 = vmatpush1.msra.mxu0 0.0
        %328 = vmatprep.subr.mxu0 0.0
        %329 = vmatpush1.msra.mxu0 0.0
        %330 = vmatprep.subr.mxu0 0.0
        %331 = vmatpush1.msra.mxu0 0.0
        %332 = vmatprep.subr.mxu0 0.0
        %333 = vmatpush1.msra.mxu0 0.0
        %334 = vmatprep.subr.mxu0 0.0
        %335 = vmatpush1.msra.mxu0 0.0
        %336 = vmatprep.subr.mxu0 0.0
        %337 = vmatpush1.msra.mxu0 0.0
        %338 = vmatprep.subr.mxu0 0.0
        %339 = vmatpush1.msra.mxu0 0.0
        %340 = vmatprep.subr.mxu0 0.0
        %341 = vmatpush1.msra.mxu0 0.0
        %342 = vmatprep.subr.mxu0 0.0
        %343 = vmatpush1.msra.mxu0 0.0
        %344 = vmatprep.subr.mxu0 0.0
        %345 = vmatpush1.msra.mxu0 0.0
        %346 = vmatprep.subr.mxu0 0.0
        %347 = vmatpush1.msra.mxu0 0.0
        %348 = vmatprep.subr.mxu0 0.0
        %349 = vmatpush1.msra.mxu0 0.0
        %350 = vmatprep.subr.mxu0 0.0
        %351 = vmatpush1.msra.mxu0 0.0
        %352 = vmatprep.subr.mxu0 0.0
        %353 = vmatpush1.msra.mxu0 0.0
        %354 = vmatprep.subr.mxu0 0.0
        %355 = vmatpush1.msra.mxu0 0.0
        %356 = vmatprep.subr.mxu0 0.0
        %357 = vmatpush1.msra.mxu0 0.0
        %358 = vmatprep.subr.mxu0 0.0
        %359 = vmatpush1.msra.mxu0 0.0
        %360 = vmatprep.subr.mxu0 0.0
        %361 = vmatpush1.msra.mxu0 0.0
        %362 = vmatprep.subr.mxu0 0.0
        %363 = vmatpush1.msra.mxu0 0.0
        %364 = vmatprep.subr.mxu0 0.0
        %365 = vmatpush1.msra.mxu0 0.0
        %366 = vmatprep.subr.mxu0 0.0
        %367 = vmatpush1.msra.mxu0 0.0
        %368 = vmatprep.subr.mxu0 0.0
        %369 = vmatpush1.msra.mxu0 0.0
        %370 = vmatprep.mubr.f32.mxu0 0.0
        %371 = vmatmul.mubr.f32.gmra.mrb[0].mxu0 %v300
        %v372 = vpop.f32.mrb[0].mxu0
        %v373 = vadd.f32 0.0, %v372
        %v374 = vpop.f32.mrb[0].mxu0
        %375 = vdwg.mxu0
        %377 = vrot.lane.b32.xlu0 %v293, 1
        %v378 = vpop.permute.xlu0 %377
        %379 = vrot.lane.b32.xlu0 %v294, 1
        %v380 = vpop.permute.xlu0 %379
        %vm381 = vcmask 7168
        %v382 = vsel %vm381, %v378, %v380
        %v384 = vsel %vm298, %v295, 0
        %v386 = vsel %vm302, %v382, 0
        %388 = vmatprep.subr.mxu0 0.0
        %389 = vmatpush1.msra.mxu0 %v386
        %390 = vmatprep.subr.mxu0 0.0
        %391 = vmatpush1.msra.mxu0 0.0
        %392 = vmatprep.subr.mxu0 0.0
        %393 = vmatpush1.msra.mxu0 0.0
        %394 = vmatprep.subr.mxu0 0.0
        %395 = vmatpush1.msra.mxu0 0.0
        %396 = vmatprep.subr.mxu0 0.0
        %397 = vmatpush1.msra.mxu0 0.0
        %398 = vmatprep.subr.mxu0 0.0
        %399 = vmatpush1.msra.mxu0 0.0
        %400 = vmatprep.subr.mxu0 0.0
        %401 = vmatpush1.msra.mxu0 0.0
        %402 = vmatprep.subr.mxu0 0.0
        %403 = vmatpush1.msra.mxu0 0.0
        %404 = vmatprep.subr.mxu0 0.0
        %405 = vmatpush1.msra.mxu0 0.0
        %406 = vmatprep.subr.mxu0 0.0
        %407 = vmatpush1.msra.mxu0 0.0
        %408 = vmatprep.subr.mxu0 0.0
        %409 = vmatpush1.msra.mxu0 0.0
        %410 = vmatprep.subr.mxu0 0.0
        %411 = vmatpush1.msra.mxu0 0.0
        %412 = vmatprep.subr.mxu0 0.0
        %413 = vmatpush1.msra.mxu0 0.0
        %414 = vmatprep.subr.mxu0 0.0
        %415 = vmatpush1.msra.mxu0 0.0
        %416 = vmatprep.subr.mxu0 0.0
        %417 = vmatpush1.msra.mxu0 0.0
        %418 = vmatprep.subr.mxu0 0.0
        %419 = vmatpush1.msra.mxu0 0.0
        %420 = vmatprep.subr.mxu0 0.0
        %421 = vmatpush1.msra.mxu0 0.0
        %422 = vmatprep.subr.mxu0 0.0
        %423 = vmatpush1.msra.mxu0 0.0
        %424 = vmatprep.subr.mxu0 0.0
        %425 = vmatpush1.msra.mxu0 0.0
        %426 = vmatprep.subr.mxu0 0.0
        %427 = vmatpush1.msra.mxu0 0.0
        %428 = vmatprep.subr.mxu0 0.0
        %429 = vmatpush1.msra.mxu0 0.0
        %430 = vmatprep.subr.mxu0 0.0
        %431 = vmatpush1.msra.mxu0 0.0
        %432 = vmatprep.subr.mxu0 0.0
        %433 = vmatpush1.msra.mxu0 0.0
        %434 = vmatprep.subr.mxu0 0.0
        %435 = vmatpush1.msra.mxu0 0.0
        %436 = vmatprep.subr.mxu0 0.0
        %437 = vmatpush1.msra.mxu0 0.0
        %438 = vmatprep.subr.mxu0 0.0
        %439 = vmatpush1.msra.mxu0 0.0
        %440 = vmatprep.subr.mxu0 0.0
        %441 = vmatpush1.msra.mxu0 0.0
        %442 = vmatprep.subr.mxu0 0.0
        %443 = vmatpush1.msra.mxu0 0.0
        %444 = vmatprep.subr.mxu0 0.0
        %445 = vmatpush1.msra.mxu0 0.0
        %446 = vmatprep.subr.mxu0 0.0
        %447 = vmatpush1.msra.mxu0 0.0
        %448 = vmatprep.subr.mxu0 0.0
        %449 = vmatpush1.msra.mxu0 0.0
        %450 = vmatprep.subr.mxu0 0.0
        %451 = vmatpush1.msra.mxu0 0.0
        %452 = vmatprep.mubr.f32.mxu0 0.0
        %453 = vmatmul.mubr.f32.gmra.mrb[0].mxu0 %v384
        %v454 = vpop.f32.mrb[0].mxu0
        %v455 = vadd.f32 %v373, %v454
        %v456 = vpop.f32.mrb[0].mxu0
        %457 = vdwg.mxu0
        %v458 = vld [vmem:[#allocation2 + $0x8] sm:$0xf]
        %v459 = vld [vmem:[#allocation2 + $0x10] sm:$0xf]
        %s460 = scalar_lea.vmem %s1, 16
        %v461 = vld [vmem:[%s460] sm:$0xff]
        %464 = vrot.lane.b32.xlu0 %v458, 127
        %v465 = vpop.permute.xlu0 %464
        %466 = vrot.lane.b32.xlu0 %v459, 127
        %v467 = vpop.permute.xlu0 %466
        %vm468 = vcmask 1039360
        %v469 = vsel %vm468, %v465, %v467
        %v471 = vsel %vm298, %v461, 0
        %v473 = vsel %vm302, %v469, 0
        %475 = vmatprep.subr.mxu0 0.0
        %476 = vmatpush1.msra.mxu0 %v473
        %477 = vmatprep.subr.mxu0 0.0
        %478 = vmatpush1.msra.mxu0 0.0
        %479 = vmatprep.subr.mxu0 0.0
        %480 = vmatpush1.msra.mxu0 0.0
        %481 = vmatprep.subr.mxu0 0.0
        %482 = vmatpush1.msra.mxu0 0.0
        %483 = vmatprep.subr.mxu0 0.0
        %484 = vmatpush1.msra.mxu0 0.0
        %485 = vmatprep.subr.mxu0 0.0
        %486 = vmatpush1.msra.mxu0 0.0
        %487 = vmatprep.subr.mxu0 0.0
        %488 = vmatpush1.msra.mxu0 0.0
        %489 = vmatprep.subr.mxu0 0.0
        %490 = vmatpush1.msra.mxu0 0.0
        %491 = vmatprep.subr.mxu0 0.0
        %492 = vmatpush1.msra.mxu0 0.0
        %493 = vmatprep.subr.mxu0 0.0
        %494 = vmatpush1.msra.mxu0 0.0
        %495 = vmatprep.subr.mxu0 0.0
        %496 = vmatpush1.msra.mxu0 0.0
        %497 = vmatprep.subr.mxu0 0.0
        %498 = vmatpush1.msra.mxu0 0.0
        %499 = vmatprep.subr.mxu0 0.0
        %500 = vmatpush1.msra.mxu0 0.0
        %501 = vmatprep.subr.mxu0 0.0
        %502 = vmatpush1.msra.mxu0 0.0
        %503 = vmatprep.subr.mxu0 0.0
        %504 = vmatpush1.msra.mxu0 0.0
        %505 = vmatprep.subr.mxu0 0.0
        %506 = vmatpush1.msra.mxu0 0.0
        %507 = vmatprep.subr.mxu0 0.0
        %508 = vmatpush1.msra.mxu0 0.0
        %509 = vmatprep.subr.mxu0 0.0
        %510 = vmatpush1.msra.mxu0 0.0
        %511 = vmatprep.subr.mxu0 0.0
        %512 = vmatpush1.msra.mxu0 0.0
        %513 = vmatprep.subr.mxu0 0.0
        %514 = vmatpush1.msra.mxu0 0.0
        %515 = vmatprep.subr.mxu0 0.0
        %516 = vmatpush1.msra.mxu0 0.0
        %517 = vmatprep.subr.mxu0 0.0
        %518 = vmatpush1.msra.mxu0 0.0
        %519 = vmatprep.subr.mxu0 0.0
        %520 = vmatpush1.msra.mxu0 0.0
        %521 = vmatprep.subr.mxu0 0.0
        %522 = vmatpush1.msra.mxu0 0.0
        %523 = vmatprep.subr.mxu0 0.0
        %524 = vmatpush1.msra.mxu0 0.0
        %525 = vmatprep.subr.mxu0 0.0
        %526 = vmatpush1.msra.mxu0 0.0
        %527 = vmatprep.subr.mxu0 0.0
        %528 = vmatpush1.msra.mxu0 0.0
        %529 = vmatprep.subr.mxu0 0.0
        %530 = vmatpush1.msra.mxu0 0.0
        %531 = vmatprep.subr.mxu0 0.0
        %532 = vmatpush1.msra.mxu0 0.0
        %533 = vmatprep.subr.mxu0 0.0
        %534 = vmatpush1.msra.mxu0 0.0
        %535 = vmatprep.subr.mxu0 0.0
        %536 = vmatpush1.msra.mxu0 0.0
        %537 = vmatprep.subr.mxu0 0.0
        %538 = vmatpush1.msra.mxu0 0.0
        %539 = vmatprep.mubr.f32.mxu0 0.0
        %540 = vmatmul.mubr.f32.gmra.mrb[0].mxu0 %v471
        %v541 = vpop.f32.mrb[0].mxu0
        %v542 = vadd.f32 0.0, %v541
        %v543 = vpop.f32.mrb[0].mxu0
        %544 = vdwg.mxu0
        %v545 = vadd.f32 %v455, %v542
        %v546 = vld [vmem:[%s2] sm:$0xff]
        %548 = vset.pattern.permute.xlu0 0
        %549 = vperm.xlu0 %548, %v546
        %v550 = vpop.permute.xlu0 %549
        %v552 = vadd.f32 %v545, %v550
        %v553 = vmax.f32 %v552, 0.0
        %554 = vst [vmem:[#allocation2 + $0x8] sm:$0xff] %v553
        %vm555 = vcmask 1047680
        %556 = vst.msk [vmem:[#allocation2 + $0x8] sm:$0xff] %vm555, 0.0
        %v557 = vld [vmem:[#allocation2] sm:$0xff]
        %v558 = vld [vmem:[#allocation2 + $0x8] sm:$0xff]
        %v559 = vld [vmem:[#allocation3] sm:$0xff]
        %s560 = scalar_lea.vmem [#allocation3], 8
        %v561 = vld [vmem:[%s560] sm:$0xff]
        %564 = vrot.lane.b32.xlu0 %v557, 1
        %v565 = vpop.permute.xlu0 %564
        %566 = vrot.lane.b32.xlu0 %v558, 1
        %v567 = vpop.permute.xlu0 %566
        %v568 = vsel %vm381, %v565, %v567
        %vm570 = vcmask 64512
        %v572 = vsel %vm570, %v561, 0
        %574 = vmatprep.subr.mxu0 0.0
        %575 = vmatpush1.msra.mxu0 %v568
        %576 = vmatprep.subr.mxu0 0.0
        %577 = vmatpush1.msra.mxu0 0.0
        %578 = vmatprep.subr.mxu0 0.0
        %579 = vmatpush1.msra.mxu0 0.0
        %580 = vmatprep.subr.mxu0 0.0
        %581 = vmatpush1.msra.mxu0 0.0
        %582 = vmatprep.subr.mxu0 0.0
        %583 = vmatpush1.msra.mxu0 0.0
        %584 = vmatprep.subr.mxu0 0.0
        %585 = vmatpush1.msra.mxu0 0.0
        %586 = vmatprep.subr.mxu0 0.0
        %587 = vmatpush1.msra.mxu0 0.0
        %588 = vmatprep.subr.mxu0 0.0
        %589 = vmatpush1.msra.mxu0 0.0
        %590 = vmatprep.subr.mxu0 0.0
        %591 = vmatpush1.msra.mxu0 0.0
        %592 = vmatprep.subr.mxu0 0.0
        %593 = vmatpush1.msra.mxu0 0.0
        %594 = vmatprep.subr.mxu0 0.0
        %595 = vmatpush1.msra.mxu0 0.0
        %596 = vmatprep.subr.mxu0 0.0
        %597 = vmatpush1.msra.mxu0 0.0
        %598 = vmatprep.subr.mxu0 0.0
        %599 = vmatpush1.msra.mxu0 0.0
        %600 = vmatprep.subr.mxu0 0.0
        %601 = vmatpush1.msra.mxu0 0.0
        %602 = vmatprep.subr.mxu0 0.0
        %603 = vmatpush1.msra.mxu0 0.0
        %604 = vmatprep.subr.mxu0 0.0
        %605 = vmatpush1.msra.mxu0 0.0
        %606 = vmatprep.subr.mxu0 0.0
        %607 = vmatpush1.msra.mxu0 0.0
        %608 = vmatprep.subr.mxu0 0.0
        %609 = vmatpush1.msra.mxu0 0.0
        %610 = vmatprep.subr.mxu0 0.0
        %611 = vmatpush1.msra.mxu0 0.0
        %612 = vmatprep.subr.mxu0 0.0
        %613 = vmatpush1.msra.mxu0 0.0
        %614 = vmatprep.subr.mxu0 0.0
        %615 = vmatpush1.msra.mxu0 0.0
        %616 = vmatprep.subr.mxu0 0.0
        %617 = vmatpush1.msra.mxu0 0.0
        %618 = vmatprep.subr.mxu0 0.0
        %619 = vmatpush1.msra.mxu0 0.0
        %620 = vmatprep.subr.mxu0 0.0
        %621 = vmatpush1.msra.mxu0 0.0
        %622 = vmatprep.subr.mxu0 0.0
        %623 = vmatpush1.msra.mxu0 0.0
        %624 = vmatprep.subr.mxu0 0.0
        %625 = vmatpush1.msra.mxu0 0.0
        %626 = vmatprep.subr.mxu0 0.0
        %627 = vmatpush1.msra.mxu0 0.0
        %628 = vmatprep.subr.mxu0 0.0
        %629 = vmatpush1.msra.mxu0 0.0
        %630 = vmatprep.subr.mxu0 0.0
        %631 = vmatpush1.msra.mxu0 0.0
        %632 = vmatprep.subr.mxu0 0.0
        %633 = vmatpush1.msra.mxu0 0.0
        %634 = vmatprep.subr.mxu0 0.0
        %635 = vmatpush1.msra.mxu0 0.0
        %636 = vmatprep.subr.mxu0 0.0
        %637 = vmatpush1.msra.mxu0 0.0
        %638 = vmatprep.mubr.f32.mxu0 0.0
        %639 = vmatmul.mubr.f32.gmra.mrb[0].mxu0 %v572
        %v640 = vpop.f32.mrb[0].mxu0
        %v641 = vadd.f32 0.0, %v640
        %v642 = vpop.f32.mrb[0].mxu0
        %643 = vdwg.mxu0
        %644 = vrot.lane.b32.xlu0 %v557, 2
        %v645 = vpop.permute.xlu0 %644
        %646 = vrot.lane.b32.xlu0 %v558, 2
        %v647 = vpop.permute.xlu0 %646
        %vm648 = vcmask 15360
        %v649 = vsel %vm648, %v645, %v647
        %v652 = vsel %vm570, %v559, 0
        %654 = vmatprep.subr.mxu0 0.0
        %655 = vmatpush1.msra.mxu0 %v649
        %656 = vmatprep.subr.mxu0 0.0
        %657 = vmatpush1.msra.mxu0 0.0
        %658 = vmatprep.subr.mxu0 0.0
        %659 = vmatpush1.msra.mxu0 0.0
        %660 = vmatprep.subr.mxu0 0.0
        %661 = vmatpush1.msra.mxu0 0.0
        %662 = vmatprep.subr.mxu0 0.0
        %663 = vmatpush1.msra.mxu0 0.0
        %664 = vmatprep.subr.mxu0 0.0
        %665 = vmatpush1.msra.mxu0 0.0
        %666 = vmatprep.subr.mxu0 0.0
        %667 = vmatpush1.msra.mxu0 0.0
        %668 = vmatprep.subr.mxu0 0.0
        %669 = vmatpush1.msra.mxu0 0.0
        %670 = vmatprep.subr.mxu0 0.0
        %671 = vmatpush1.msra.mxu0 0.0
        %672 = vmatprep.subr.mxu0 0.0
        %673 = vmatpush1.msra.mxu0 0.0
        %674 = vmatprep.subr.mxu0 0.0
        %675 = vmatpush1.msra.mxu0 0.0
        %676 = vmatprep.subr.mxu0 0.0
        %677 = vmatpush1.msra.mxu0 0.0
        %678 = vmatprep.subr.mxu0 0.0
        %679 = vmatpush1.msra.mxu0 0.0
        %680 = vmatprep.subr.mxu0 0.0
        %681 = vmatpush1.msra.mxu0 0.0
        %682 = vmatprep.subr.mxu0 0.0
        %683 = vmatpush1.msra.mxu0 0.0
        %684 = vmatprep.subr.mxu0 0.0
        %685 = vmatpush1.msra.mxu0 0.0
        %686 = vmatprep.subr.mxu0 0.0
        %687 = vmatpush1.msra.mxu0 0.0
        %688 = vmatprep.subr.mxu0 0.0
        %689 = vmatpush1.msra.mxu0 0.0
        %690 = vmatprep.subr.mxu0 0.0
        %691 = vmatpush1.msra.mxu0 0.0
        %692 = vmatprep.subr.mxu0 0.0
        %693 = vmatpush1.msra.mxu0 0.0
        %694 = vmatprep.subr.mxu0 0.0
        %695 = vmatpush1.msra.mxu0 0.0
        %696 = vmatprep.subr.mxu0 0.0
        %697 = vmatpush1.msra.mxu0 0.0
        %698 = vmatprep.subr.mxu0 0.0
        %699 = vmatpush1.msra.mxu0 0.0
        %700 = vmatprep.subr.mxu0 0.0
        %701 = vmatpush1.msra.mxu0 0.0
        %702 = vmatprep.subr.mxu0 0.0
        %703 = vmatpush1.msra.mxu0 0.0
        %704 = vmatprep.subr.mxu0 0.0
        %705 = vmatpush1.msra.mxu0 0.0
        %706 = vmatprep.subr.mxu0 0.0
        %707 = vmatpush1.msra.mxu0 0.0
        %708 = vmatprep.subr.mxu0 0.0
        %709 = vmatpush1.msra.mxu0 0.0
        %710 = vmatprep.subr.mxu0 0.0
        %711 = vmatpush1.msra.mxu0 0.0
        %712 = vmatprep.subr.mxu0 0.0
        %713 = vmatpush1.msra.mxu0 0.0
        %714 = vmatprep.subr.mxu0 0.0
        %715 = vmatpush1.msra.mxu0 0.0
        %716 = vmatprep.subr.mxu0 0.0
        %717 = vmatpush1.msra.mxu0 0.0
        %718 = vmatprep.mubr.f32.mxu0 0.0
        %719 = vmatmul.mubr.f32.gmra.mrb[0].mxu0 %v652
        %v720 = vpop.f32.mrb[0].mxu0
        %v721 = vadd.f32 %v641, %v720
        %v722 = vpop.f32.mrb[0].mxu0
        %723 = vdwg.mxu0
        %s724 = scalar_lea.vmem [#allocation3], 16
        %v725 = vld [vmem:[%s724] sm:$0xff]
        %v727 = vsel %vm570, %v725, 0
        %729 = vmatprep.subr.mxu0 0.0
        %730 = vmatpush1.msra.mxu0 %v558
        %731 = vmatprep.subr.mxu0 0.0
        %732 = vmatpush1.msra.mxu0 0.0
        %733 = vmatprep.subr.mxu0 0.0
        %734 = vmatpush1.msra.mxu0 0.0
        %735 = vmatprep.subr.mxu0 0.0
        %736 = vmatpush1.msra.mxu0 0.0
        %737 = vmatprep.subr.mxu0 0.0
        %738 = vmatpush1.msra.mxu0 0.0
        %739 = vmatprep.subr.mxu0 0.0
        %740 = vmatpush1.msra.mxu0 0.0
        %741 = vmatprep.subr.mxu0 0.0
        %742 = vmatpush1.msra.mxu0 0.0
        %743 = vmatprep.subr.mxu0 0.0
        %744 = vmatpush1.msra.mxu0 0.0
        %745 = vmatprep.subr.mxu0 0.0
        %746 = vmatpush1.msra.mxu0 0.0
        %747 = vmatprep.subr.mxu0 0.0
        %748 = vmatpush1.msra.mxu0 0.0
        %749 = vmatprep.subr.mxu0 0.0
        %750 = vmatpush1.msra.mxu0 0.0
        %751 = vmatprep.subr.mxu0 0.0
        %752 = vmatpush1.msra.mxu0 0.0
        %753 = vmatprep.subr.mxu0 0.0
        %754 = vmatpush1.msra.mxu0 0.0
        %755 = vmatprep.subr.mxu0 0.0
        %756 = vmatpush1.msra.mxu0 0.0
        %757 = vmatprep.subr.mxu0 0.0
        %758 = vmatpush1.msra.mxu0 0.0
        %759 = vmatprep.subr.mxu0 0.0
        %760 = vmatpush1.msra.mxu0 0.0
        %761 = vmatprep.subr.mxu0 0.0
        %762 = vmatpush1.msra.mxu0 0.0
        %763 = vmatprep.subr.mxu0 0.0
        %764 = vmatpush1.msra.mxu0 0.0
        %765 = vmatprep.subr.mxu0 0.0
        %766 = vmatpush1.msra.mxu0 0.0
        %767 = vmatprep.subr.mxu0 0.0
        %768 = vmatpush1.msra.mxu0 0.0
        %769 = vmatprep.subr.mxu0 0.0
        %770 = vmatpush1.msra.mxu0 0.0
        %771 = vmatprep.subr.mxu0 0.0
        %772 = vmatpush1.msra.mxu0 0.0
        %773 = vmatprep.subr.mxu0 0.0
        %774 = vmatpush1.msra.mxu0 0.0
        %775 = vmatprep.subr.mxu0 0.0
        %776 = vmatpush1.msra.mxu0 0.0
        %777 = vmatprep.subr.mxu0 0.0
        %778 = vmatpush1.msra.mxu0 0.0
        %779 = vmatprep.subr.mxu0 0.0
        %780 = vmatpush1.msra.mxu0 0.0
        %781 = vmatprep.subr.mxu0 0.0
        %782 = vmatpush1.msra.mxu0 0.0
        %783 = vmatprep.subr.mxu0 0.0
        %784 = vmatpush1.msra.mxu0 0.0
        %785 = vmatprep.subr.mxu0 0.0
        %786 = vmatpush1.msra.mxu0 0.0
        %787 = vmatprep.subr.mxu0 0.0
        %788 = vmatpush1.msra.mxu0 0.0
        %789 = vmatprep.subr.mxu0 0.0
        %790 = vmatpush1.msra.mxu0 0.0
        %791 = vmatprep.subr.mxu0 0.0
        %792 = vmatpush1.msra.mxu0 0.0
        %793 = vmatprep.mubr.f32.mxu0 0.0
        %794 = vmatmul.mubr.f32.gmra.mrb[0].mxu0 %v727
        %v795 = vpop.f32.mrb[0].mxu0
        %v796 = vadd.f32 0.0, %v795
        %v797 = vpop.f32.mrb[0].mxu0
        %798 = vdwg.mxu0
        %v799 = vadd.f32 %v721, %v796
        %v800 = vld [vmem:[#allocation2 + $0x8] sm:$0xff]
        %v801 = vld [vmem:[#allocation2 + $0x10] sm:$0xff]
        %s802 = scalar_lea.vmem [#allocation3], 24
        %v803 = vld [vmem:[%s802] sm:$0xff]
        %806 = vrot.lane.b32.xlu0 %v800, 127
        %v807 = vpop.permute.xlu0 %806
        %808 = vrot.lane.b32.xlu0 %v801, 127
        %v809 = vpop.permute.xlu0 %808
        %v810 = vsel %vm468, %v807, %v809
        %v813 = vsel %vm570, %v803, 0
        %815 = vmatprep.subr.mxu0 0.0
        %816 = vmatpush1.msra.mxu0 %v810
        %817 = vmatprep.subr.mxu0 0.0
        %818 = vmatpush1.msra.mxu0 0.0
        %819 = vmatprep.subr.mxu0 0.0
        %820 = vmatpush1.msra.mxu0 0.0
        %821 = vmatprep.subr.mxu0 0.0
        %822 = vmatpush1.msra.mxu0 0.0
        %823 = vmatprep.subr.mxu0 0.0
        %824 = vmatpush1.msra.mxu0 0.0
        %825 = vmatprep.subr.mxu0 0.0
        %826 = vmatpush1.msra.mxu0 0.0
        %827 = vmatprep.subr.mxu0 0.0
        %828 = vmatpush1.msra.mxu0 0.0
        %829 = vmatprep.subr.mxu0 0.0
        %830 = vmatpush1.msra.mxu0 0.0
        %831 = vmatprep.subr.mxu0 0.0
        %832 = vmatpush1.msra.mxu0 0.0
        %833 = vmatprep.subr.mxu0 0.0
        %834 = vmatpush1.msra.mxu0 0.0
        %835 = vmatprep.subr.mxu0 0.0
        %836 = vmatpush1.msra.mxu0 0.0
        %837 = vmatprep.subr.mxu0 0.0
        %838 = vmatpush1.msra.mxu0 0.0
        %839 = vmatprep.subr.mxu0 0.0
        %840 = vmatpush1.msra.mxu0 0.0
        %841 = vmatprep.subr.mxu0 0.0
        %842 = vmatpush1.msra.mxu0 0.0
        %843 = vmatprep.subr.mxu0 0.0
        %844 = vmatpush1.msra.mxu0 0.0
        %845 = vmatprep.subr.mxu0 0.0
        %846 = vmatpush1.msra.mxu0 0.0
        %847 = vmatprep.subr.mxu0 0.0
        %848 = vmatpush1.msra.mxu0 0.0
        %849 = vmatprep.subr.mxu0 0.0
        %850 = vmatpush1.msra.mxu0 0.0
        %851 = vmatprep.subr.mxu0 0.0
        %852 = vmatpush1.msra.mxu0 0.0
        %853 = vmatprep.subr.mxu0 0.0
        %854 = vmatpush1.msra.mxu0 0.0
        %855 = vmatprep.subr.mxu0 0.0
        %856 = vmatpush1.msra.mxu0 0.0
        %857 = vmatprep.subr.mxu0 0.0
        %858 = vmatpush1.msra.mxu0 0.0
        %859 = vmatprep.subr.mxu0 0.0
        %860 = vmatpush1.msra.mxu0 0.0
        %861 = vmatprep.subr.mxu0 0.0
        %862 = vmatpush1.msra.mxu0 0.0
        %863 = vmatprep.subr.mxu0 0.0
        %864 = vmatpush1.msra.mxu0 0.0
        %865 = vmatprep.subr.mxu0 0.0
        %866 = vmatpush1.msra.mxu0 0.0
        %867 = vmatprep.subr.mxu0 0.0
        %868 = vmatpush1.msra.mxu0 0.0
        %869 = vmatprep.subr.mxu0 0.0
        %870 = vmatpush1.msra.mxu0 0.0
        %871 = vmatprep.subr.mxu0 0.0
        %872 = vmatpush1.msra.mxu0 0.0
        %873 = vmatprep.subr.mxu0 0.0
        %874 = vmatpush1.msra.mxu0 0.0
        %875 = vmatprep.subr.mxu0 0.0
        %876 = vmatpush1.msra.mxu0 0.0
        %877 = vmatprep.subr.mxu0 0.0
        %878 = vmatpush1.msra.mxu0 0.0
        %879 = vmatprep.mubr.f32.mxu0 0.0
        %880 = vmatmul.mubr.f32.gmra.mrb[0].mxu0 %v813
        %v881 = vpop.f32.mrb[0].mxu0
        %v882 = vadd.f32 0.0, %v881
        %v883 = vpop.f32.mrb[0].mxu0
        %884 = vdwg.mxu0
        %v885 = vadd.f32 %v799, %v882
        %s886 = scalar_lea.vmem [#allocation3], 32
        %v887 = vld [vmem:[%s886] sm:$0xff]
        %888 = vrot.lane.b32.xlu0 %v800, 126
        %v889 = vpop.permute.xlu0 %888
        %890 = vrot.lane.b32.xlu0 %v801, 126
        %v891 = vpop.permute.xlu0 %890
        %vm892 = vcmask 1031168
        %v893 = vsel %vm892, %v889, %v891
        %v896 = vsel %vm570, %v887, 0
        %898 = vmatprep.subr.mxu0 0.0
        %899 = vmatpush1.msra.mxu0 %v893
        %900 = vmatprep.subr.mxu0 0.0
        %901 = vmatpush1.msra.mxu0 0.0
        %902 = vmatprep.subr.mxu0 0.0
        %903 = vmatpush1.msra.mxu0 0.0
        %904 = vmatprep.subr.mxu0 0.0
        %905 = vmatpush1.msra.mxu0 0.0
        %906 = vmatprep.subr.mxu0 0.0
        %907 = vmatpush1.msra.mxu0 0.0
        %908 = vmatprep.subr.mxu0 0.0
        %909 = vmatpush1.msra.mxu0 0.0
        %910 = vmatprep.subr.mxu0 0.0
        %911 = vmatpush1.msra.mxu0 0.0
        %912 = vmatprep.subr.mxu0 0.0
        %913 = vmatpush1.msra.mxu0 0.0
        %914 = vmatprep.subr.mxu0 0.0
        %915 = vmatpush1.msra.mxu0 0.0
        %916 = vmatprep.subr.mxu0 0.0
        %917 = vmatpush1.msra.mxu0 0.0
        %918 = vmatprep.subr.mxu0 0.0
        %919 = vmatpush1.msra.mxu0 0.0
        %920 = vmatprep.subr.mxu0 0.0
        %921 = vmatpush1.msra.mxu0 0.0
        %922 = vmatprep.subr.mxu0 0.0
        %923 = vmatpush1.msra.mxu0 0.0
        %924 = vmatprep.subr.mxu0 0.0
        %925 = vmatpush1.msra.mxu0 0.0
        %926 = vmatprep.subr.mxu0 0.0
        %927 = vmatpush1.msra.mxu0 0.0
        %928 = vmatprep.subr.mxu0 0.0
        %929 = vmatpush1.msra.mxu0 0.0
        %930 = vmatprep.subr.mxu0 0.0
        %931 = vmatpush1.msra.mxu0 0.0
        %932 = vmatprep.subr.mxu0 0.0
        %933 = vmatpush1.msra.mxu0 0.0
        %934 = vmatprep.subr.mxu0 0.0
        %935 = vmatpush1.msra.mxu0 0.0
        %936 = vmatprep.subr.mxu0 0.0
        %937 = vmatpush1.msra.mxu0 0.0
        %938 = vmatprep.subr.mxu0 0.0
        %939 = vmatpush1.msra.mxu0 0.0
        %940 = vmatprep.subr.mxu0 0.0
        %941 = vmatpush1.msra.mxu0 0.0
        %942 = vmatprep.subr.mxu0 0.0
        %943 = vmatpush1.msra.mxu0 0.0
        %944 = vmatprep.subr.mxu0 0.0
        %945 = vmatpush1.msra.mxu0 0.0
        %946 = vmatprep.subr.mxu0 0.0
        %947 = vmatpush1.msra.mxu0 0.0
        %948 = vmatprep.subr.mxu0 0.0
        %949 = vmatpush1.msra.mxu0 0.0
        %950 = vmatprep.subr.mxu0 0.0
        %951 = vmatpush1.msra.mxu0 0.0
        %952 = vmatprep.subr.mxu0 0.0
        %953 = vmatpush1.msra.mxu0 0.0
        %954 = vmatprep.subr.mxu0 0.0
        %955 = vmatpush1.msra.mxu0 0.0
        %956 = vmatprep.subr.mxu0 0.0
        %957 = vmatpush1.msra.mxu0 0.0
        %958 = vmatprep.subr.mxu0 0.0
        %959 = vmatpush1.msra.mxu0 0.0
        %960 = vmatprep.subr.mxu0 0.0
        %961 = vmatpush1.msra.mxu0 0.0
        %962 = vmatprep.mubr.f32.mxu0 0.0
        %963 = vmatmul.mubr.f32.gmra.mrb[0].mxu0 %v896
        %v964 = vpop.f32.mrb[0].mxu0
        %v965 = vadd.f32 0.0, %v964
        %v966 = vpop.f32.mrb[0].mxu0
        %967 = vdwg.mxu0
        %v968 = vadd.f32 %v885, %v965
        %v969 = vld [vmem:[%s4] sm:$0xff]
        %971 = vset.pattern.permute.xlu0 0
        %972 = vperm.xlu0 %971, %v969
        %v973 = vpop.permute.xlu0 %972
        %v975 = vadd.f32 %v968, %v973
        %v976 = vmax.f32 %v975, 0.0
        %977 = vst [vmem:[#allocation2 + $0x8] sm:$0xff] %v976
        %978 = vst.msk [vmem:[#allocation2 + $0x8] sm:$0xff] %vm555, 0.0
        %v979 = vld [vmem:[#allocation2] sm:$0xff]
        %v980 = vld [vmem:[#allocation2 + $0x8] sm:$0xff]
        %v981 = vld [vmem:[%s5] sm:$0xff]
        %s982 = scalar_lea.vmem %s5, 8
        %v983 = vld [vmem:[%s982] sm:$0xff]
        %986 = vrot.lane.b32.xlu0 %v979, 2
        %v987 = vpop.permute.xlu0 %986
        %988 = vrot.lane.b32.xlu0 %v980, 2
        %v989 = vpop.permute.xlu0 %988
        %v990 = vsel %vm648, %v987, %v989
        %v993 = vsel %vm570, %v983, 0
        %995 = vmatprep.subr.mxu0 0.0
        %996 = vmatpush1.msra.mxu0 %v990
        %997 = vmatprep.subr.mxu0 0.0
        %998 = vmatpush1.msra.mxu0 0.0
        %999 = vmatprep.subr.mxu0 0.0
        %1000 = vmatpush1.msra.mxu0 0.0
        %1001 = vmatprep.subr.mxu0 0.0
        %1002 = vmatpush1.msra.mxu0 0.0
        %1003 = vmatprep.subr.mxu0 0.0
        %1004 = vmatpush1.msra.mxu0 0.0
        %1005 = vmatprep.subr.mxu0 0.0
        %1006 = vmatpush1.msra.mxu0 0.0
        %1007 = vmatprep.subr.mxu0 0.0
        %1008 = vmatpush1.msra.mxu0 0.0
        %1009 = vmatprep.subr.mxu0 0.0
        %1010 = vmatpush1.msra.mxu0 0.0
        %1011 = vmatprep.subr.mxu0 0.0
        %1012 = vmatpush1.msra.mxu0 0.0
        %1013 = vmatprep.subr.mxu0 0.0
        %1014 = vmatpush1.msra.mxu0 0.0
        %1015 = vmatprep.subr.mxu0 0.0
        %1016 = vmatpush1.msra.mxu0 0.0
        %1017 = vmatprep.subr.mxu0 0.0
        %1018 = vmatpush1.msra.mxu0 0.0
        %1019 = vmatprep.subr.mxu0 0.0
        %1020 = vmatpush1.msra.mxu0 0.0
        %1021 = vmatprep.subr.mxu0 0.0
        %1022 = vmatpush1.msra.mxu0 0.0
        %1023 = vmatprep.subr.mxu0 0.0
        %1024 = vmatpush1.msra.mxu0 0.0
        %1025 = vmatprep.subr.mxu0 0.0
        %1026 = vmatpush1.msra.mxu0 0.0
        %1027 = vmatprep.subr.mxu0 0.0
        %1028 = vmatpush1.msra.mxu0 0.0
        %1029 = vmatprep.subr.mxu0 0.0
        %1030 = vmatpush1.msra.mxu0 0.0
        %1031 = vmatprep.subr.mxu0 0.0
        %1032 = vmatpush1.msra.mxu0 0.0
        %1033 = vmatprep.subr.mxu0 0.0
        %1034 = vmatpush1.msra.mxu0 0.0
        %1035 = vmatprep.subr.mxu0 0.0
        %1036 = vmatpush1.msra.mxu0 0.0
        %1037 = vmatprep.subr.mxu0 0.0
        %1038 = vmatpush1.msra.mxu0 0.0
        %1039 = vmatprep.subr.mxu0 0.0
        %1040 = vmatpush1.msra.mxu0 0.0
        %1041 = vmatprep.subr.mxu0 0.0
        %1042 = vmatpush1.msra.mxu0 0.0
        %1043 = vmatprep.subr.mxu0 0.0
        %1044 = vmatpush1.msra.mxu0 0.0
        %1045 = vmatprep.subr.mxu0 0.0
        %1046 = vmatpush1.msra.mxu0 0.0
        %1047 = vmatprep.subr.mxu0 0.0
        %1048 = vmatpush1.msra.mxu0 0.0
        %1049 = vmatprep.subr.mxu0 0.0
        %1050 = vmatpush1.msra.mxu0 0.0
        %1051 = vmatprep.subr.mxu0 0.0
        %1052 = vmatpush1.msra.mxu0 0.0
        %1053 = vmatprep.subr.mxu0 0.0
        %1054 = vmatpush1.msra.mxu0 0.0
        %1055 = vmatprep.subr.mxu0 0.0
        %1056 = vmatpush1.msra.mxu0 0.0
        %1057 = vmatprep.subr.mxu0 0.0
        %1058 = vmatpush1.msra.mxu0 0.0
        %1059 = vmatprep.mubr.f32.mxu0 0.0
        %1060 = vmatmul.mubr.f32.gmra.mrb[0].mxu0 %v993
        %v1061 = vpop.f32.mrb[0].mxu0
        %v1062 = vadd.f32 0.0, %v1061
        %v1063 = vpop.f32.mrb[0].mxu0
        %1064 = vdwg.mxu0
        %1065 = vrot.lane.b32.xlu0 %v979, 3
        %v1066 = vpop.permute.xlu0 %1065
        %1067 = vrot.lane.b32.xlu0 %v980, 3
        %v1068 = vpop.permute.xlu0 %1067
        %vm1069 = vcmask 23552
        %v1070 = vsel %vm1069, %v1066, %v1068
        %v1073 = vsel %vm570, %v981, 0
        %1075 = vmatprep.subr.mxu0 0.0
        %1076 = vmatpush1.msra.mxu0 %v1070
        %1077 = vmatprep.subr.mxu0 0.0
        %1078 = vmatpush1.msra.mxu0 0.0
        %1079 = vmatprep.subr.mxu0 0.0
        %1080 = vmatpush1.msra.mxu0 0.0
        %1081 = vmatprep.subr.mxu0 0.0
        %1082 = vmatpush1.msra.mxu0 0.0
        %1083 = vmatprep.subr.mxu0 0.0
        %1084 = vmatpush1.msra.mxu0 0.0
        %1085 = vmatprep.subr.mxu0 0.0
        %1086 = vmatpush1.msra.mxu0 0.0
        %1087 = vmatprep.subr.mxu0 0.0
        %1088 = vmatpush1.msra.mxu0 0.0
        %1089 = vmatprep.subr.mxu0 0.0
        %1090 = vmatpush1.msra.mxu0 0.0
        %1091 = vmatprep.subr.mxu0 0.0
        %1092 = vmatpush1.msra.mxu0 0.0
        %1093 = vmatprep.subr.mxu0 0.0
        %1094 = vmatpush1.msra.mxu0 0.0
        %1095 = vmatprep.subr.mxu0 0.0
        %1096 = vmatpush1.msra.mxu0 0.0
        %1097 = vmatprep.subr.mxu0 0.0
        %1098 = vmatpush1.msra.mxu0 0.0
        %1099 = vmatprep.subr.mxu0 0.0
        %1100 = vmatpush1.msra.mxu0 0.0
        %1101 = vmatprep.subr.mxu0 0.0
        %1102 = vmatpush1.msra.mxu0 0.0
        %1103 = vmatprep.subr.mxu0 0.0
        %1104 = vmatpush1.msra.mxu0 0.0
        %1105 = vmatprep.subr.mxu0 0.0
        %1106 = vmatpush1.msra.mxu0 0.0
        %1107 = vmatprep.subr.mxu0 0.0
        %1108 = vmatpush1.msra.mxu0 0.0
        %1109 = vmatprep.subr.mxu0 0.0
        %1110 = vmatpush1.msra.mxu0 0.0
        %1111 = vmatprep.subr.mxu0 0.0
        %1112 = vmatpush1.msra.mxu0 0.0
        %1113 = vmatprep.subr.mxu0 0.0
        %1114 = vmatpush1.msra.mxu0 0.0
        %1115 = vmatprep.subr.mxu0 0.0
        %1116 = vmatpush1.msra.mxu0 0.0
        %1117 = vmatprep.subr.mxu0 0.0
        %1118 = vmatpush1.msra.mxu0 0.0
        %1119 = vmatprep.subr.mxu0 0.0
        %1120 = vmatpush1.msra.mxu0 0.0
        %1121 = vmatprep.subr.mxu0 0.0
        %1122 = vmatpush1.msra.mxu0 0.0
        %1123 = vmatprep.subr.mxu0 0.0
        %1124 = vmatpush1.msra.mxu0 0.0
        %1125 = vmatprep.subr.mxu0 0.0
        %1126 = vmatpush1.msra.mxu0 0.0
        %1127 = vmatprep.subr.mxu0 0.0
        %1128 = vmatpush1.msra.mxu0 0.0
        %1129 = vmatprep.subr.mxu0 0.0
        %1130 = vmatpush1.msra.mxu0 0.0
        %1131 = vmatprep.subr.mxu0 0.0
        %1132 = vmatpush1.msra.mxu0 0.0
        %1133 = vmatprep.subr.mxu0 0.0
        %1134 = vmatpush1.msra.mxu0 0.0
        %1135 = vmatprep.subr.mxu0 0.0
        %1136 = vmatpush1.msra.mxu0 0.0
        %1137 = vmatprep.subr.mxu0 0.0
        %1138 = vmatpush1.msra.mxu0 0.0
        %1139 = vmatprep.mubr.f32.mxu0 0.0
        %1140 = vmatmul.mubr.f32.gmra.mrb[0].mxu0 %v1073
        %v1141 = vpop.f32.mrb[0].mxu0
        %v1142 = vadd.f32 %v1062, %v1141
        %v1143 = vpop.f32.mrb[0].mxu0
        %1144 = vdwg.mxu0
        %s1145 = scalar_lea.vmem %s5, 16
        %v1146 = vld [vmem:[%s1145] sm:$0xff]
        %1147 = vrot.lane.b32.xlu0 %v979, 1
        %v1148 = vpop.permute.xlu0 %1147
        %1149 = vrot.lane.b32.xlu0 %v980, 1
        %v1150 = vpop.permute.xlu0 %1149
        %v1151 = vsel %vm381, %v1148, %v1150
        %v1154 = vsel %vm570, %v1146, 0
        %1156 = vmatprep.subr.mxu0 0.0
        %1157 = vmatpush1.msra.mxu0 %v1151
        %1158 = vmatprep.subr.mxu0 0.0
        %1159 = vmatpush1.msra.mxu0 0.0
        %1160 = vmatprep.subr.mxu0 0.0
        %1161 = vmatpush1.msra.mxu0 0.0
        %1162 = vmatprep.subr.mxu0 0.0
        %1163 = vmatpush1.msra.mxu0 0.0
        %1164 = vmatprep.subr.mxu0 0.0
        %1165 = vmatpush1.msra.mxu0 0.0
        %1166 = vmatprep.subr.mxu0 0.0
        %1167 = vmatpush1.msra.mxu0 0.0
        %1168 = vmatprep.subr.mxu0 0.0
        %1169 = vmatpush1.msra.mxu0 0.0
        %1170 = vmatprep.subr.mxu0 0.0
        %1171 = vmatpush1.msra.mxu0 0.0
        %1172 = vmatprep.subr.mxu0 0.0
        %1173 = vmatpush1.msra.mxu0 0.0
        %1174 = vmatprep.subr.mxu0 0.0
        %1175 = vmatpush1.msra.mxu0 0.0
        %1176 = vmatprep.subr.mxu0 0.0
        %1177 = vmatpush1.msra.mxu0 0.0
        %1178 = vmatprep.subr.mxu0 0.0
        %1179 = vmatpush1.msra.mxu0 0.0
        %1180 = vmatprep.subr.mxu0 0.0
        %1181 = vmatpush1.msra.mxu0 0.0
        %1182 = vmatprep.subr.mxu0 0.0
        %1183 = vmatpush1.msra.mxu0 0.0
        %1184 = vmatprep.subr.mxu0 0.0
        %1185 = vmatpush1.msra.mxu0 0.0
        %1186 = vmatprep.subr.mxu0 0.0
        %1187 = vmatpush1.msra.mxu0 0.0
        %1188 = vmatprep.subr.mxu0 0.0
        %1189 = vmatpush1.msra.mxu0 0.0
        %1190 = vmatprep.subr.mxu0 0.0
        %1191 = vmatpush1.msra.mxu0 0.0
        %1192 = vmatprep.subr.mxu0 0.0
        %1193 = vmatpush1.msra.mxu0 0.0
        %1194 = vmatprep.subr.mxu0 0.0
        %1195 = vmatpush1.msra.mxu0 0.0
        %1196 = vmatprep.subr.mxu0 0.0
        %1197 = vmatpush1.msra.mxu0 0.0
        %1198 = vmatprep.subr.mxu0 0.0
        %1199 = vmatpush1.msra.mxu0 0.0
        %1200 = vmatprep.subr.mxu0 0.0
        %1201 = vmatpush1.msra.mxu0 0.0
        %1202 = vmatprep.subr.mxu0 0.0
        %1203 = vmatpush1.msra.mxu0 0.0
        %1204 = vmatprep.subr.mxu0 0.0
        %1205 = vmatpush1.msra.mxu0 0.0
        %1206 = vmatprep.subr.mxu0 0.0
        %1207 = vmatpush1.msra.mxu0 0.0
        %1208 = vmatprep.subr.mxu0 0.0
        %1209 = vmatpush1.msra.mxu0 0.0
        %1210 = vmatprep.subr.mxu0 0.0
        %1211 = vmatpush1.msra.mxu0 0.0
        %1212 = vmatprep.subr.mxu0 0.0
        %1213 = vmatpush1.msra.mxu0 0.0
        %1214 = vmatprep.subr.mxu0 0.0
        %1215 = vmatpush1.msra.mxu0 0.0
        %1216 = vmatprep.subr.mxu0 0.0
        %1217 = vmatpush1.msra.mxu0 0.0
        %1218 = vmatprep.subr.mxu0 0.0
        %1219 = vmatpush1.msra.mxu0 0.0
        %1220 = vmatprep.mubr.f32.mxu0 0.0
        %1221 = vmatmul.mubr.f32.gmra.mrb[0].mxu0 %v1154
        %v1222 = vpop.f32.mrb[0].mxu0
        %v1223 = vadd.f32 0.0, %v1222
        %v1224 = vpop.f32.mrb[0].mxu0
        %1225 = vdwg.mxu0
        %v1226 = vadd.f32 %v1142, %v1223
        %s1227 = scalar_lea.vmem %s5, 24
        %v1228 = vld [vmem:[%s1227] sm:$0xff]
        %v1230 = vsel %vm570, %v1228, 0
        %1232 = vmatprep.subr.mxu0 0.0
        %1233 = vmatpush1.msra.mxu0 %v980
        %1234 = vmatprep.subr.mxu0 0.0
        %1235 = vmatpush1.msra.mxu0 0.0
        %1236 = vmatprep.subr.mxu0 0.0
        %1237 = vmatpush1.msra.mxu0 0.0
        %1238 = vmatprep.subr.mxu0 0.0
        %1239 = vmatpush1.msra.mxu0 0.0
        %1240 = vmatprep.subr.mxu0 0.0
        %1241 = vmatpush1.msra.mxu0 0.0
        %1242 = vmatprep.subr.mxu0 0.0
        %1243 = vmatpush1.msra.mxu0 0.0
        %1244 = vmatprep.subr.mxu0 0.0
        %1245 = vmatpush1.msra.mxu0 0.0
        %1246 = vmatprep.subr.mxu0 0.0
        %1247 = vmatpush1.msra.mxu0 0.0
        %1248 = vmatprep.subr.mxu0 0.0
        %1249 = vmatpush1.msra.mxu0 0.0
        %1250 = vmatprep.subr.mxu0 0.0
        %1251 = vmatpush1.msra.mxu0 0.0
        %1252 = vmatprep.subr.mxu0 0.0
        %1253 = vmatpush1.msra.mxu0 0.0
        %1254 = vmatprep.subr.mxu0 0.0
        %1255 = vmatpush1.msra.mxu0 0.0
        %1256 = vmatprep.subr.mxu0 0.0
        %1257 = vmatpush1.msra.mxu0 0.0
        %1258 = vmatprep.subr.mxu0 0.0
        %1259 = vmatpush1.msra.mxu0 0.0
        %1260 = vmatprep.subr.mxu0 0.0
        %1261 = vmatpush1.msra.mxu0 0.0
        %1262 = vmatprep.subr.mxu0 0.0
        %1263 = vmatpush1.msra.mxu0 0.0
        %1264 = vmatprep.subr.mxu0 0.0
        %1265 = vmatpush1.msra.mxu0 0.0
        %1266 = vmatprep.subr.mxu0 0.0
        %1267 = vmatpush1.msra.mxu0 0.0
        %1268 = vmatprep.subr.mxu0 0.0
        %1269 = vmatpush1.msra.mxu0 0.0
        %1270 = vmatprep.subr.mxu0 0.0
        %1271 = vmatpush1.msra.mxu0 0.0
        %1272 = vmatprep.subr.mxu0 0.0
        %1273 = vmatpush1.msra.mxu0 0.0
        %1274 = vmatprep.subr.mxu0 0.0
        %1275 = vmatpush1.msra.mxu0 0.0
        %1276 = vmatprep.subr.mxu0 0.0
        %1277 = vmatpush1.msra.mxu0 0.0
        %1278 = vmatprep.subr.mxu0 0.0
        %1279 = vmatpush1.msra.mxu0 0.0
        %1280 = vmatprep.subr.mxu0 0.0
        %1281 = vmatpush1.msra.mxu0 0.0
        %1282 = vmatprep.subr.mxu0 0.0
        %1283 = vmatpush1.msra.mxu0 0.0
        %1284 = vmatprep.subr.mxu0 0.0
        %1285 = vmatpush1.msra.mxu0 0.0
        %1286 = vmatprep.subr.mxu0 0.0
        %1287 = vmatpush1.msra.mxu0 0.0
        %1288 = vmatprep.subr.mxu0 0.0
        %1289 = vmatpush1.msra.mxu0 0.0
        %1290 = vmatprep.subr.mxu0 0.0
        %1291 = vmatpush1.msra.mxu0 0.0
        %1292 = vmatprep.subr.mxu0 0.0
        %1293 = vmatpush1.msra.mxu0 0.0
        %1294 = vmatprep.subr.mxu0 0.0
        %1295 = vmatpush1.msra.mxu0 0.0
        %1296 = vmatprep.mubr.f32.mxu0 0.0
        %1297 = vmatmul.mubr.f32.gmra.mrb[0].mxu0 %v1230
        %v1298 = vpop.f32.mrb[0].mxu0
        %v1299 = vadd.f32 0.0, %v1298
        %v1300 = vpop.f32.mrb[0].mxu0
        %1301 = vdwg.mxu0
        %v1302 = vadd.f32 %v1226, %v1299
        %v1303 = vld [vmem:[#allocation2 + $0x8] sm:$0xff]
        %v1304 = vld [vmem:[#allocation2 + $0x10] sm:$0xff]
        %s1305 = scalar_lea.vmem %s5, 32
        %v1306 = vld [vmem:[%s1305] sm:$0xff]
        %1309 = vrot.lane.b32.xlu0 %v1303, 127
        %v1310 = vpop.permute.xlu0 %1309
        %1311 = vrot.lane.b32.xlu0 %v1304, 127
        %v1312 = vpop.permute.xlu0 %1311
        %v1313 = vsel %vm468, %v1310, %v1312
        %v1316 = vsel %vm570, %v1306, 0
        %1318 = vmatprep.subr.mxu0 0.0
        %1319 = vmatpush1.msra.mxu0 %v1313
        %1320 = vmatprep.subr.mxu0 0.0
        %1321 = vmatpush1.msra.mxu0 0.0
        %1322 = vmatprep.subr.mxu0 0.0
        %1323 = vmatpush1.msra.mxu0 0.0
        %1324 = vmatprep.subr.mxu0 0.0
        %1325 = vmatpush1.msra.mxu0 0.0
        %1326 = vmatprep.subr.mxu0 0.0
        %1327 = vmatpush1.msra.mxu0 0.0
        %1328 = vmatprep.subr.mxu0 0.0
        %1329 = vmatpush1.msra.mxu0 0.0
        %1330 = vmatprep.subr.mxu0 0.0
        %1331 = vmatpush1.msra.mxu0 0.0
        %1332 = vmatprep.subr.mxu0 0.0
        %1333 = vmatpush1.msra.mxu0 0.0
        %1334 = vmatprep.subr.mxu0 0.0
        %1335 = vmatpush1.msra.mxu0 0.0
        %1336 = vmatprep.subr.mxu0 0.0
        %1337 = vmatpush1.msra.mxu0 0.0
        %1338 = vmatprep.subr.mxu0 0.0
        %1339 = vmatpush1.msra.mxu0 0.0
        %1340 = vmatprep.subr.mxu0 0.0
        %1341 = vmatpush1.msra.mxu0 0.0
        %1342 = vmatprep.subr.mxu0 0.0
        %1343 = vmatpush1.msra.mxu0 0.0
        %1344 = vmatprep.subr.mxu0 0.0
        %1345 = vmatpush1.msra.mxu0 0.0
        %1346 = vmatprep.subr.mxu0 0.0
        %1347 = vmatpush1.msra.mxu0 0.0
        %1348 = vmatprep.subr.mxu0 0.0
        %1349 = vmatpush1.msra.mxu0 0.0
        %1350 = vmatprep.subr.mxu0 0.0
        %1351 = vmatpush1.msra.mxu0 0.0
        %1352 = vmatprep.subr.mxu0 0.0
        %1353 = vmatpush1.msra.mxu0 0.0
        %1354 = vmatprep.subr.mxu0 0.0
        %1355 = vmatpush1.msra.mxu0 0.0
        %1356 = vmatprep.subr.mxu0 0.0
        %1357 = vmatpush1.msra.mxu0 0.0
        %1358 = vmatprep.subr.mxu0 0.0
        %1359 = vmatpush1.msra.mxu0 0.0
        %1360 = vmatprep.subr.mxu0 0.0
        %1361 = vmatpush1.msra.mxu0 0.0
        %1362 = vmatprep.subr.mxu0 0.0
        %1363 = vmatpush1.msra.mxu0 0.0
        %1364 = vmatprep.subr.mxu0 0.0
        %1365 = vmatpush1.msra.mxu0 0.0
        %1366 = vmatprep.subr.mxu0 0.0
        %1367 = vmatpush1.msra.mxu0 0.0
        %1368 = vmatprep.subr.mxu0 0.0
        %1369 = vmatpush1.msra.mxu0 0.0
        %1370 = vmatprep.subr.mxu0 0.0
        %1371 = vmatpush1.msra.mxu0 0.0
        %1372 = vmatprep.subr.mxu0 0.0
        %1373 = vmatpush1.msra.mxu0 0.0
        %1374 = vmatprep.subr.mxu0 0.0
        %1375 = vmatpush1.msra.mxu0 0.0
        %1376 = vmatprep.subr.mxu0 0.0
        %1377 = vmatpush1.msra.mxu0 0.0
        %1378 = vmatprep.subr.mxu0 0.0
        %1379 = vmatpush1.msra.mxu0 0.0
        %1380 = vmatprep.subr.mxu0 0.0
        %1381 = vmatpush1.msra.mxu0 0.0
        %1382 = vmatprep.mubr.f32.mxu0 0.0
        %1383 = vmatmul.mubr.f32.gmra.mrb[0].mxu0 %v1316
        %v1384 = vpop.f32.mrb[0].mxu0
        %v1385 = vadd.f32 0.0, %v1384
        %v1386 = vpop.f32.mrb[0].mxu0
        %1387 = vdwg.mxu0
        %v1388 = vadd.f32 %v1302, %v1385
        %s1389 = scalar_lea.vmem %s5, 40
        %v1390 = vld [vmem:[%s1389] sm:$0xff]
        %1391 = vrot.lane.b32.xlu0 %v1303, 126
        %v1392 = vpop.permute.xlu0 %1391
        %1393 = vrot.lane.b32.xlu0 %v1304, 126
        %v1394 = vpop.permute.xlu0 %1393
        %v1395 = vsel %vm892, %v1392, %v1394
        %v1398 = vsel %vm570, %v1390, 0
        %1400 = vmatprep.subr.mxu0 0.0
        %1401 = vmatpush1.msra.mxu0 %v1395
        %1402 = vmatprep.subr.mxu0 0.0
        %1403 = vmatpush1.msra.mxu0 0.0
        %1404 = vmatprep.subr.mxu0 0.0
        %1405 = vmatpush1.msra.mxu0 0.0
        %1406 = vmatprep.subr.mxu0 0.0
        %1407 = vmatpush1.msra.mxu0 0.0
        %1408 = vmatprep.subr.mxu0 0.0
        %1409 = vmatpush1.msra.mxu0 0.0
        %1410 = vmatprep.subr.mxu0 0.0
        %1411 = vmatpush1.msra.mxu0 0.0
        %1412 = vmatprep.subr.mxu0 0.0
        %1413 = vmatpush1.msra.mxu0 0.0
        %1414 = vmatprep.subr.mxu0 0.0
        %1415 = vmatpush1.msra.mxu0 0.0
        %1416 = vmatprep.subr.mxu0 0.0
        %1417 = vmatpush1.msra.mxu0 0.0
        %1418 = vmatprep.subr.mxu0 0.0
        %1419 = vmatpush1.msra.mxu0 0.0
        %1420 = vmatprep.subr.mxu0 0.0
        %1421 = vmatpush1.msra.mxu0 0.0
        %1422 = vmatprep.subr.mxu0 0.0
        %1423 = vmatpush1.msra.mxu0 0.0
        %1424 = vmatprep.subr.mxu0 0.0
        %1425 = vmatpush1.msra.mxu0 0.0
        %1426 = vmatprep.subr.mxu0 0.0
        %1427 = vmatpush1.msra.mxu0 0.0
        %1428 = vmatprep.subr.mxu0 0.0
        %1429 = vmatpush1.msra.mxu0 0.0
        %1430 = vmatprep.subr.mxu0 0.0
        %1431 = vmatpush1.msra.mxu0 0.0
        %1432 = vmatprep.subr.mxu0 0.0
        %1433 = vmatpush1.msra.mxu0 0.0
        %1434 = vmatprep.subr.mxu0 0.0
        %1435 = vmatpush1.msra.mxu0 0.0
        %1436 = vmatprep.subr.mxu0 0.0
        %1437 = vmatpush1.msra.mxu0 0.0
        %1438 = vmatprep.subr.mxu0 0.0
        %1439 = vmatpush1.msra.mxu0 0.0
        %1440 = vmatprep.subr.mxu0 0.0
        %1441 = vmatpush1.msra.mxu0 0.0
        %1442 = vmatprep.subr.mxu0 0.0
        %1443 = vmatpush1.msra.mxu0 0.0
        %1444 = vmatprep.subr.mxu0 0.0
        %1445 = vmatpush1.msra.mxu0 0.0
        %1446 = vmatprep.subr.mxu0 0.0
        %1447 = vmatpush1.msra.mxu0 0.0
        %1448 = vmatprep.subr.mxu0 0.0
        %1449 = vmatpush1.msra.mxu0 0.0
        %1450 = vmatprep.subr.mxu0 0.0
        %1451 = vmatpush1.msra.mxu0 0.0
        %1452 = vmatprep.subr.mxu0 0.0
        %1453 = vmatpush1.msra.mxu0 0.0
        %1454 = vmatprep.subr.mxu0 0.0
        %1455 = vmatpush1.msra.mxu0 0.0
        %1456 = vmatprep.subr.mxu0 0.0
        %1457 = vmatpush1.msra.mxu0 0.0
        %1458 = vmatprep.subr.mxu0 0.0
        %1459 = vmatpush1.msra.mxu0 0.0
        %1460 = vmatprep.subr.mxu0 0.0
        %1461 = vmatpush1.msra.mxu0 0.0
        %1462 = vmatprep.subr.mxu0 0.0
        %1463 = vmatpush1.msra.mxu0 0.0
        %1464 = vmatprep.mubr.f32.mxu0 0.0
        %1465 = vmatmul.mubr.f32.gmra.mrb[0].mxu0 %v1398
        %v1466 = vpop.f32.mrb[0].mxu0
        %v1467 = vadd.f32 0.0, %v1466
        %v1468 = vpop.f32.mrb[0].mxu0
        %1469 = vdwg.mxu0
        %v1470 = vadd.f32 %v1388, %v1467
        %s1471 = scalar_lea.vmem %s5, 48
        %v1472 = vld [vmem:[%s1471] sm:$0xff]
        %1473 = vrot.lane.b32.xlu0 %v1303, 125
        %v1474 = vpop.permute.xlu0 %1473
        %1475 = vrot.lane.b32.xlu0 %v1304, 125
        %v1476 = vpop.permute.xlu0 %1475
        %vm1477 = vcmask 1022976
        %v1478 = vsel %vm1477, %v1474, %v1476
        %v1481 = vsel %vm570, %v1472, 0
        %1483 = vmatprep.subr.mxu0 0.0
        %1484 = vmatpush1.msra.mxu0 %v1478
        %1485 = vmatprep.subr.mxu0 0.0
        %1486 = vmatpush1.msra.mxu0 0.0
        %1487 = vmatprep.subr.mxu0 0.0
        %1488 = vmatpush1.msra.mxu0 0.0
        %1489 = vmatprep.subr.mxu0 0.0
        %1490 = vmatpush1.msra.mxu0 0.0
        %1491 = vmatprep.subr.mxu0 0.0
        %1492 = vmatpush1.msra.mxu0 0.0
        %1493 = vmatprep.subr.mxu0 0.0
        %1494 = vmatpush1.msra.mxu0 0.0
        %1495 = vmatprep.subr.mxu0 0.0
        %1496 = vmatpush1.msra.mxu0 0.0
        %1497 = vmatprep.subr.mxu0 0.0
        %1498 = vmatpush1.msra.mxu0 0.0
        %1499 = vmatprep.subr.mxu0 0.0
        %1500 = vmatpush1.msra.mxu0 0.0
        %1501 = vmatprep.subr.mxu0 0.0
        %1502 = vmatpush1.msra.mxu0 0.0
        %1503 = vmatprep.subr.mxu0 0.0
        %1504 = vmatpush1.msra.mxu0 0.0
        %1505 = vmatprep.subr.mxu0 0.0
        %1506 = vmatpush1.msra.mxu0 0.0
        %1507 = vmatprep.subr.mxu0 0.0
        %1508 = vmatpush1.msra.mxu0 0.0
        %1509 = vmatprep.subr.mxu0 0.0
        %1510 = vmatpush1.msra.mxu0 0.0
        %1511 = vmatprep.subr.mxu0 0.0
        %1512 = vmatpush1.msra.mxu0 0.0
        %1513 = vmatprep.subr.mxu0 0.0
        %1514 = vmatpush1.msra.mxu0 0.0
        %1515 = vmatprep.subr.mxu0 0.0
        %1516 = vmatpush1.msra.mxu0 0.0
        %1517 = vmatprep.subr.mxu0 0.0
        %1518 = vmatpush1.msra.mxu0 0.0
        %1519 = vmatprep.subr.mxu0 0.0
        %1520 = vmatpush1.msra.mxu0 0.0
        %1521 = vmatprep.subr.mxu0 0.0
        %1522 = vmatpush1.msra.mxu0 0.0
        %1523 = vmatprep.subr.mxu0 0.0
        %1524 = vmatpush1.msra.mxu0 0.0
        %1525 = vmatprep.subr.mxu0 0.0
        %1526 = vmatpush1.msra.mxu0 0.0
        %1527 = vmatprep.subr.mxu0 0.0
        %1528 = vmatpush1.msra.mxu0 0.0
        %1529 = vmatprep.subr.mxu0 0.0
        %1530 = vmatpush1.msra.mxu0 0.0
        %1531 = vmatprep.subr.mxu0 0.0
        %1532 = vmatpush1.msra.mxu0 0.0
        %1533 = vmatprep.subr.mxu0 0.0
        %1534 = vmatpush1.msra.mxu0 0.0
        %1535 = vmatprep.subr.mxu0 0.0
        %1536 = vmatpush1.msra.mxu0 0.0
        %1537 = vmatprep.subr.mxu0 0.0
        %1538 = vmatpush1.msra.mxu0 0.0
        %1539 = vmatprep.subr.mxu0 0.0
        %1540 = vmatpush1.msra.mxu0 0.0
        %1541 = vmatprep.subr.mxu0 0.0
        %1542 = vmatpush1.msra.mxu0 0.0
        %1543 = vmatprep.subr.mxu0 0.0
        %1544 = vmatpush1.msra.mxu0 0.0
        %1545 = vmatprep.subr.mxu0 0.0
        %1546 = vmatpush1.msra.mxu0 0.0
        %1547 = vmatprep.mubr.f32.mxu0 0.0
        %1548 = vmatmul.mubr.f32.gmra.mrb[0].mxu0 %v1481
        %v1549 = vpop.f32.mrb[0].mxu0
        %v1550 = vadd.f32 0.0, %v1549
        %v1551 = vpop.f32.mrb[0].mxu0
        %1552 = vdwg.mxu0
        %v1553 = vadd.f32 %v1470, %v1550
        %v1554 = vld [vmem:[%s6] sm:$0xff]
        %1556 = vset.pattern.permute.xlu0 0
        %1557 = vperm.xlu0 %1556, %v1554
        %v1558 = vpop.permute.xlu0 %1557
        %v1560 = vadd.f32 %v1553, %v1558
        %v1561 = vmax.f32 %v1560, 0.0
        %1562 = vst [vmem:[%s284] sm:$0xff] %v1561
        %s1563 = sand.u32 %s182, 1
        %s1564 = scalar_lea.sflag [#allocation5], %s1563
        %s1565 = sand.u32 %s182, 1
        %s1566 = smul.addr %s1565, 8
        %s1567 = scalar_lea.vmem [#allocation6], %s1566
        // Predicated region
        $region53: #{tpu_custom_call.1} parent=47 // pred_check
          %p1568 = pneg %p192
        $region54: #{tpu_custom_call.1} parent=47 // pred_check_branch
          %1570 = sbr.rel (%p1568) target = $region56
        $region55: #{tpu_custom_call.1} parent=47 // pred_region
          %s1572 = ssub.s32 128, 128
          %1573 = vsyncadd %s1564, %s1572
          %s1574 = smul.addr %s22, 128
          %s1575 = scalar_lea.hbm %s7, %s1574
          %s1577 = sshll.u32 %s1567, 4
          %s1578 = int_to_ptr.vmem [resolvable:$true] %s1577
          %1580 = dma.vmem_to_hbm [thread:$0]  %s1578, 128, %s1575, %s1564
        $region56: #{tpu_custom_call.1} parent=47 // pred_fallthru
          _
      $region48: #{tpu_custom_call.1} parent=5 // pred_fallthru
        _
      %p1581 = scmp.le.s32.totalorder 2, %s17
      // Predicated region
      $region57: #{tpu_custom_call.1} parent=5 // pred_check
        %p1582 = pneg %p1581
      $region58: #{tpu_custom_call.1} parent=5 // pred_check_branch
        %1584 = sbr.rel (%p1582) target = $region60
      $region59: #{tpu_custom_call.1} parent=5 // pred_region
        %s1585 = ssub.s32 %s17, 2
        // Predicated region
        $region61: #{tpu_custom_call.1} parent=59 // pred_check
          %p1586 = pneg %p198
        $region62: #{tpu_custom_call.1} parent=59 // pred_check_branch
          %1588 = sbr.rel (%p1586) target = $region64
        $region63: #{tpu_custom_call.1} parent=59 // pred_region
          %s1589 = sand.u32 %s183, 1
          %s1590 = scalar_lea.sflag [#allocation5], %s1589
          %s1591 = sand.u32 %s183, 1
          %s1592 = smul.addr %s1591, 8
          %s1593 = scalar_lea.vmem [#allocation6], %s1592
          %1594 = dma.done %s1590, 128
        $region64: #{tpu_custom_call.1} parent=59 // pred_fallthru
          _
      $region60: #{tpu_custom_call.1} parent=5 // pred_fallthru
        _
    $region6: #{tpu_custom_call.1} parent=1 // loop_footer
      %s21 = sadd.s32 1, %s17
    $region7: #{tpu_custom_call.1} parent=1 // loop_footer_branch
      %16 = sbr.rel target = $region3
    $region8: #{tpu_custom_call.1} parent=1 // loop_exit
      _
    %1595 = vsyncpa [#allocation4], 1
    %s1596 = scalar_lea.sflag [#allocation4], 1
    %1597 = vsyncpa %s1596, 1
    %1598 = vsyncpa [#allocation5], 1
    %s1599 = scalar_lea.sflag [#allocation5], 1
    %1600 = vsyncpa %s1599, 1

</llo_original>
